<compile_context>
chip_gen: v7x
topology: tpu7x:2x2x1
jax: 0.10.0
libtpu: 0.0.40
codegen_flags: <defaults>
</compile_context>

<pallas_src>
import functools

import jax
import jax.numpy as jnp
from jax import lax
from jax.experimental import pallas as pl
from jax.experimental.pallas import tpu as pltpu

EPS = 1e-6  # LayerNorm2d eps (NAFNet convention)

# Tap offsets (dh, dw); order matches a row-major flattened nn.Conv2d kernel.
TAPS_1X3 = [(0, -1), (0, 0), (0, 1)]                             # (1,3), pad (0,1)
TAPS_3X3 = [(i - 1, j - 1) for i in range(3) for j in range(3)]  # (3,3), pad (1,1)
TAPS_3X1 = [(-1, 0), (0, 0), (1, 0)]                             # (3,1), pad (1,0)

# Row index of the precomputed boundary mask for each (dh, dw) tap.
MASK_ROW = {(0, -1): 0, (0, 1): 1, (-1, 0): 2, (1, 0): 3,
            (-1, -1): 4, (-1, 1): 5, (1, -1): 6, (1, 1): 7}


def mddem_kernel(x_ref, par_ref, aux_ref, out_ref, *, C, H, W, Bt):
    HW = H * W
    N = Bt * HW
    C2 = 2 * C

    x_in = x_ref[...]                 # (C, N): channels on sublanes, pixels on lanes
    par = par_ref[...]                # (2C, 30 + 8C)  packed parameters
    aux = aux_ref[...]                # (8 + Bt, N)    boundary masks + image indicators

    # ---- unpack parameters (static slices, no data movement) ----------------
    pc = par[:C, 0:10]
    n1w, n1b = pc[:, 0:1], pc[:, 1:2]
    n2w, n2b = pc[:, 2:3], pc[:, 3:4]
    c2b, casb = pc[:, 4:5], pc[:, 5:6]
    c3b, c5b = pc[:, 6:7], pc[:, 7:8]
    beta, gamma = pc[:, 8:9], pc[:, 9:10]

    p2c = par[:, 10:30]
    c1b, c4b = p2c[:, 0:1], p2c[:, 1:2]
    d1b, d2b, d3b = p2c[:, 2:3], p2c[:, 3:4], p2c[:, 4:5]
    d1w = p2c[:, 5:8]                 # (2C, 3)
    d2w = p2c[:, 8:17]                # (2C, 9)
    d3w = p2c[:, 17:20]               # (2C, 3)

    c1w = par[:, 30:30 + C]           # (2C, C)
    c4w = par[:, 30 + C:30 + 2 * C]   # (2C, C)
    wo = par[:C, 30 + 2 * C:30 + 8 * C]   # (C, 6C)
    c2w = wo[:, 0:3 * C]
    casw = wo[:, 3 * C:4 * C]
    c3w = wo[:, 4 * C:5 * C]
    c5w = wo[:, 5 * C:6 * C]

    def layernorm(x, w, b):           # LayerNorm2d: normalize over channels (axis 0)
        mu = jnp.mean(x, axis=0, keepdims=True)
        d = x - mu
        var = jnp.mean(d * d, axis=0, keepdims=True)
        return d * lax.rsqrt(var + EPS) * w + b

    def conv1x1(x, w, b=None):
        cin = x.shape[0]
        if cin <= 8:
            # tiny contraction: unrolled VPU broadcast-FMA avoids MXU fill/pop latency
            acc = w[:, 0:1] * x[0:1, :]
            for i in range(1, cin):
                acc = acc + w[:, i:i + 1] * x[i:i + 1, :]
        else:
            acc = jnp.dot(w, x, preferred_element_type=jnp.float32)
        return acc if b is None else acc + b

    # ---- first (spatial mixing) branch --------------------------------------
    x = layernorm(x_in, n1w, n1b)
    x1 = conv1x1(x, c1w, c1b)                                   # (2C, N)

    # 9 shared shifted taps: XLU lane rolls + per-image boundary masks (no halo slab)
    taps = {}
    for dh in (-1, 0, 1):
        for dw in (-1, 0, 1):
            off = dh * W + dw
            if off == 0:
                taps[(dh, dw)] = x1
            else:
                t = pltpu.roll(x1, shift=(-off) % N, axis=1)    # out[p] = x1[p + off]
                r = MASK_ROW[(dh, dw)]
                taps[(dh, dw)] = t * aux[r:r + 1, :]

    def dwconv(w, b, keys):           # depthwise conv = weighted sum of shared taps
        acc = None
        for k, key in enumerate(keys):
            t = w[:, k:k + 1] * taps[key]
            acc = t if acc is None else acc + t
        return acc + b

    f1 = dwconv(d1w, d1b, TAPS_1X3)
    f2 = dwconv(d2w, d2b, TAPS_3X3)
    f3 = dwconv(d3w, d3b, TAPS_3X1)

    # SimpleGate on cat(f1,f2,f3) + conv2: three partial 1x1 convs (no sublane concat)
    x = (conv1x1(f1[:C] * f2[C:], c2w[:, 0:C])
         + conv1x1(f1[C:] * f3[:C], c2w[:, C:2 * C])
         + conv1x1(f2[:C] * f3[C:], c2w[:, 2 * C:3 * C])
         + c2b)

    # simplified channel attention: per-image global average pool, THEN 1x1 conv
    if Bt == 1:
        pooled = jnp.mean(x, axis=1, keepdims=True)             # (C, 1)
        casv = conv1x1(pooled, casw, casb)                      # (C, 1)
        x = x * casv
    else:
        ind = aux[8:8 + Bt, :]                                  # (Bt, N) per-image indicators
        pooled = lax.dot_general(x, ind, (((1,), (1,)), ((), ())),
                                 preferred_element_type=jnp.float32) * (1.0 / HW)  # (C, Bt)
        casv = conv1x1(pooled, casw, casb)                      # (C, Bt)
        x = x * jnp.dot(casv, ind, preferred_element_type=jnp.float32)

    x = conv1x1(x, c3w, c3b)
    y = x_in + x * beta

    # ---- FFN branch ----------------------------------------------------------
    z = layernorm(y, n2w, n2b)
    z = conv1x1(z, c4w, c4b)                                    # (2C, N)
    z = z[:C] * z[C:]                                           # SimpleGate
    z = conv1x1(z, c5w, c5b)

    out_ref[...] = (y + z * gamma).astype(out_ref.dtype)


# ---------------------------- host-side packing ------------------------------
def pack_params(P, c):
    """Pack all 36 module parameters (torch layout) into one (2C, 30+8C) slab."""
    c2 = 2 * c

    def col(v):
        return v.reshape(-1, 1).astype(jnp.float32)

    def mat(v):  # conv weight (Cout, Cin, 1, 1) -> (Cout, Cin)
        return v.reshape(v.shape[0], -1).astype(jnp.float32)

    pc = jnp.concatenate([
        col(P['n1w']), col(P['n1b']), col(P['n2w']), col(P['n2b']),
        col(P['c2b']), col(P['casb']), col(P['c3b']), col(P['c5b']),
        col(P['beta']), col(P['gamma'])], axis=1)                        # (C, 10)
    pc = jnp.concatenate([pc, jnp.zeros((c, 10), jnp.float32)], axis=0)  # (2C, 10)

    p2c = jnp.concatenate([
        col(P['c1b']), col(P['c4b']),
        col(P['d1b']), col(P['d2b']), col(P['d3b']),
        P['d1w'].reshape(c2, 3).astype(jnp.float32),
        P['d2w'].reshape(c2, 9).astype(jnp.float32),
        P['d3w'].reshape(c2, 3).astype(jnp.float32)], axis=1)            # (2C, 20)

    w_in = jnp.concatenate([mat(P['c1w']), mat(P['c4w'])], axis=1)       # (2C, 2C)
    w_out = jnp.concatenate([mat(P['c2w']), mat(P['casw']),
                             mat(P['c3w']), mat(P['c5w'])], axis=1)      # (C, 6C)
    w_out = jnp.concatenate([w_out, jnp.zeros((c, 6 * c), jnp.float32)], axis=0)

    return jnp.concatenate([pc, p2c, w_in, w_out], axis=1)               # (2C, 30+8C)


def build_aux(H, W, Bt):
    """Boundary masks (8 rows) + per-image indicators (Bt rows) for one chunk."""
    HW = H * W
    N = Bt * HW
    p = jnp.arange(N, dtype=jnp.int32)
    col = p % W
    row = (p % HW) // W
    m_l = (col > 0).astype(jnp.float32)        # source column w-1 exists
    m_r = (col < W - 1).astype(jnp.float32)    # source column w+1 exists
    m_t = (row > 0).astype(jnp.float32)        # source row h-1 exists (same image)
    m_b = (row < H - 1).astype(jnp.float32)    # source row h+1 exists (same image)
    masks = jnp.stack([m_l, m_r, m_t, m_b,
                       m_t * m_l, m_t * m_r, m_b * m_l, m_b * m_r], axis=0)   # (8, N)
    ind = (jnp.arange(Bt, dtype=jnp.int32)[:, None] == (p // HW)[None, :])
    return jnp.concatenate([masks, ind.astype(jnp.float32)], axis=0)          # (8+Bt, N)


def _choose_bt(B, HW):
    """Images per grid step: aim for ~16K lanes, keep >=2 grid steps when possible."""
    target_lanes = 16384          # lane-dense store sweet spot; also keeps the f32
    bt = max(1, min(B, target_lanes // max(HW, 1)))   # live set well under v7x VMEM
    if B >= 2:
        while bt > 1 and (B + bt - 1) // bt < 2:      # >=2 steps for v7x's 2 TCs
            bt -= 1
    while B % bt != 0:            # even split (no ragged last chunk)
        bt -= 1
    return bt


def mddem_forward(inp_nchw, P):
    B, C, H, W = inp_nchw.shape
    HW = H * W
    Bt = _choose_bt(B, HW)
    n_chunks = B // Bt
    N = Bt * HW

    # fold batch into the lane axis: (B,C,H,W) -> (C, B*HW)   (layout plumbing only)
    x = jnp.transpose(inp_nchw, (1, 0, 2, 3)).reshape(C, B * HW)
    par = pack_params(P, C)                   # (2C, 30+8C), resident
    aux = build_aux(H, W, Bt)                 # (8+Bt, N),   resident

    kernel = functools.partial(mddem_kernel, C=C, H=H, W=W, Bt=Bt)
    out = pl.pallas_call(
        kernel,
        out_shape=jax.ShapeDtypeStruct((C, B * HW), inp_nchw.dtype),
        grid=(n_chunks,),
        in_specs=[
            pl.BlockSpec((C, N), lambda b: (0, b)),
            pl.BlockSpec(par.shape, lambda b: (0, 0)),
            pl.BlockSpec(aux.shape, lambda b: (0, 0)),
        ],
        out_specs=pl.BlockSpec((C, N), lambda b: (0, b)),
        compiler_params=pltpu.CompilerParams(dimension_semantics=("parallel",)),
    )(x, par, aux)

    return jnp.transpose(out.reshape(C, B, H, W), (1, 0, 2, 3))


# ------------------------- pure-JAX reference (NCHW) -------------------------
def mddem_reference(inp, P):
    C = inp.shape[1]

    def ln(x, w, b):
        mu = x.mean(axis=1, keepdims=True)
        var = ((x - mu) ** 2).mean(axis=1, keepdims=True)
        return ((x - mu) / jnp.sqrt(var + EPS) * w.reshape(1, -1, 1, 1)
                + b.reshape(1, -1, 1, 1))

    def conv1x1(x, w, b):
        w2 = w.reshape(w.shape[0], w.shape[1])
        return jnp.einsum('oi,bihw->bohw', w2, x) + b.reshape(1, -1, 1, 1)

    def dwconv(x, w, b, ph, pw):
        ch = x.shape[1]
        y = lax.conv_general_dilated(
            x, w, (1, 1), ((ph, ph), (pw, pw)),
            dimension_numbers=('NCHW', 'OIHW', 'NCHW'), feature_group_count=ch)
        return y + b.reshape(1, -1, 1, 1)

    x = ln(inp, P['n1w'], P['n1b'])
    x = conv1x1(x, P['c1w'], P['c1b'])
    f1 = dwconv(x, P['d1w'], P['d1b'], 0, 1)
    f2 = dwconv(x, P['d2w'], P['d2b'], 1, 1)
    f3 = dwconv(x, P['d3w'], P['d3b'], 1, 0)
    f = jnp.concatenate([f1, f2, f3], axis=1)
    half = f.shape[1] // 2
    x = f[:, :half] * f[:, half:]
    x = conv1x1(x, P['c2w'], P['c2b'])
    pooled = x.mean(axis=(2, 3), keepdims=True)
    cas = conv1x1(pooled, P['casw'], P['casb'])
    x = x * cas
    x = conv1x1(x, P['c3w'], P['c3b'])
    y = inp + x * P['beta']
    z = conv1x1(ln(y, P['n2w'], P['n2b']), P['c4w'], P['c4b'])
    z = z[:, :C] * z[:, C:]
    z = conv1x1(z, P['c5w'], P['c5b'])
    return y + z * P['gamma']


def init_params(key, c):
    nc = 2 * c   # DW_Expand * c (also FFN_Expand * c since both are 2)
    shapes = dict(
        n1w=(c,), n1b=(c,),
        c1w=(nc, c, 1, 1), c1b=(nc,),
        d1w=(nc, 1, 1, 3), d1b=(nc,),    # depthwise (1,3)
        d2w=(nc, 1, 3, 3), d2b=(nc,),    # depthwise (3,3)
        d3w=(nc, 1, 3, 1), d3b=(nc,),    # depthwise (3,1)
        c2w=(c, 3 * c, 1, 1), c2b=(c,),
        casw=(c, c, 1, 1), casb=(c,),
        c3w=(c, c, 1, 1), c3b=(c,),
        n2w=(c,), n2b=(c,),
        c4w=(nc, c, 1, 1), c4b=(nc,),
        c5w=(c, c, 1, 1), c5b=(c,),
        beta=(1, c, 1, 1), gamma=(1, c, 1, 1),   # module inits to 0; nonzero here
    )
    keys = jax.random.split(key, len(shapes))
    return {name: 0.2 * jax.random.normal(k, shp, jnp.float32)
            for k, (name, shp) in zip(keys, shapes.items())}


if __name__ == "__main__":
    B, C, H, W = 2, 4, 16, 16
    key = jax.random.PRNGKey(0)
    kx, kp = jax.random.split(key)

    inp = jax.random.normal(kx, (B, C, H, W), jnp.float32)   # module (NCHW) layout
    params = init_params(kp, C)

    out = mddem_forward(inp, params)
    out = jax.block_until_ready(out)

    ref = mddem_reference(inp, params)
    max_err = float(jnp.max(jnp.abs(out - ref)))
    assert jnp.allclose(out, ref, rtol=2e-4, atol=2e-4), f"max_err={max_err}"
    print("KERNEL_OK")
</pallas_src>

<mosaic_0001>
module attributes {stable_mosaic.version = 11 : i64} {
  func.func @mddem_kernel(%arg0: i32, %arg1: memref<4x256xf32, #tpu.memory_space<vmem>>, %arg2: memref<8x62xf32, #tpu.memory_space<vmem>>, %arg3: memref<9x256xf32, #tpu.memory_space<vmem>>, %arg4: memref<4x256xf32, #tpu.memory_space<vmem>>) attributes {dimension_semantics = [#tpu.dimension_semantics<parallel>], iteration_bounds = array<i64: 2>, scalar_prefetch = 0 : i64, scratch_operands = 0 : i64, tpu.core_type = #tpu.core_type<tc>, window_params = [{transform_indices = @transform_0, window_bounds = array<i64: 4, 256>}, {pipeline_mode = #tpu.pipeline_mode<synchronous>, transform_indices = @transform_1, window_bounds = array<i64: 8, 62>}, {pipeline_mode = #tpu.pipeline_mode<synchronous>, transform_indices = @transform_2, window_bounds = array<i64: 9, 256>}, {transform_indices = @transform_3, window_bounds = array<i64: 4, 256>}]} {
    %c0 = arith.constant 0 : index
    %c0_0 = arith.constant 0 : index
    %0 = vector.load %arg1[%c0, %c0_0] : memref<4x256xf32, #tpu.memory_space<vmem>>, vector<4x256xf32>
    %c0_1 = arith.constant 0 : index
    %c0_2 = arith.constant 0 : index
    %1 = vector.load %arg2[%c0_1, %c0_2] : memref<8x62xf32, #tpu.memory_space<vmem>>, vector<8x62xf32>
    %c0_3 = arith.constant 0 : index
    %c0_4 = arith.constant 0 : index
    %2 = vector.load %arg3[%c0_3, %c0_4] : memref<9x256xf32, #tpu.memory_space<vmem>>, vector<9x256xf32>
    %3 = vector.extract_strided_slice %1 {offsets = [0, 0], sizes = [4, 10], strides = [1, 1]} : vector<8x62xf32> to vector<4x10xf32>
    %4 = vector.extract_strided_slice %3 {offsets = [0, 0], sizes = [4, 1], strides = [1, 1]} : vector<4x10xf32> to vector<4x1xf32>
    %5 = vector.extract_strided_slice %3 {offsets = [0, 1], sizes = [4, 1], strides = [1, 1]} : vector<4x10xf32> to vector<4x1xf32>
    %6 = vector.extract_strided_slice %3 {offsets = [0, 2], sizes = [4, 1], strides = [1, 1]} : vector<4x10xf32> to vector<4x1xf32>
    %7 = vector.extract_strided_slice %3 {offsets = [0, 3], sizes = [4, 1], strides = [1, 1]} : vector<4x10xf32> to vector<4x1xf32>
    %8 = vector.extract_strided_slice %3 {offsets = [0, 4], sizes = [4, 1], strides = [1, 1]} : vector<4x10xf32> to vector<4x1xf32>
    %9 = vector.extract_strided_slice %3 {offsets = [0, 5], sizes = [4, 1], strides = [1, 1]} : vector<4x10xf32> to vector<4x1xf32>
    %10 = vector.extract_strided_slice %3 {offsets = [0, 6], sizes = [4, 1], strides = [1, 1]} : vector<4x10xf32> to vector<4x1xf32>
    %11 = vector.extract_strided_slice %3 {offsets = [0, 7], sizes = [4, 1], strides = [1, 1]} : vector<4x10xf32> to vector<4x1xf32>
    %12 = vector.extract_strided_slice %3 {offsets = [0, 8], sizes = [4, 1], strides = [1, 1]} : vector<4x10xf32> to vector<4x1xf32>
    %13 = vector.extract_strided_slice %3 {offsets = [0, 9], sizes = [4, 1], strides = [1, 1]} : vector<4x10xf32> to vector<4x1xf32>
    %14 = vector.extract_strided_slice %1 {offsets = [0, 10], sizes = [8, 20], strides = [1, 1]} : vector<8x62xf32> to vector<8x20xf32>
    %15 = vector.extract_strided_slice %14 {offsets = [0, 0], sizes = [8, 1], strides = [1, 1]} : vector<8x20xf32> to vector<8x1xf32>
    %16 = vector.extract_strided_slice %14 {offsets = [0, 1], sizes = [8, 1], strides = [1, 1]} : vector<8x20xf32> to vector<8x1xf32>
    %17 = vector.extract_strided_slice %14 {offsets = [0, 2], sizes = [8, 1], strides = [1, 1]} : vector<8x20xf32> to vector<8x1xf32>
    %18 = vector.extract_strided_slice %14 {offsets = [0, 3], sizes = [8, 1], strides = [1, 1]} : vector<8x20xf32> to vector<8x1xf32>
    %19 = vector.extract_strided_slice %14 {offsets = [0, 4], sizes = [8, 1], strides = [1, 1]} : vector<8x20xf32> to vector<8x1xf32>
    %20 = vector.extract_strided_slice %14 {offsets = [0, 5], sizes = [8, 3], strides = [1, 1]} : vector<8x20xf32> to vector<8x3xf32>
    %21 = vector.extract_strided_slice %14 {offsets = [0, 8], sizes = [8, 9], strides = [1, 1]} : vector<8x20xf32> to vector<8x9xf32>
    %22 = vector.extract_strided_slice %14 {offsets = [0, 17], sizes = [8, 3], strides = [1, 1]} : vector<8x20xf32> to vector<8x3xf32>
    %23 = vector.extract_strided_slice %1 {offsets = [0, 30], sizes = [8, 4], strides = [1, 1]} : vector<8x62xf32> to vector<8x4xf32>
    %24 = vector.extract_strided_slice %1 {offsets = [0, 34], sizes = [8, 4], strides = [1, 1]} : vector<8x62xf32> to vector<8x4xf32>
    %25 = vector.extract_strided_slice %1 {offsets = [0, 38], sizes = [4, 24], strides = [1, 1]} : vector<8x62xf32> to vector<4x24xf32>
    %26 = vector.extract_strided_slice %25 {offsets = [0, 0], sizes = [4, 12], strides = [1, 1]} : vector<4x24xf32> to vector<4x12xf32>
    %27 = vector.extract_strided_slice %25 {offsets = [0, 12], sizes = [4, 4], strides = [1, 1]} : vector<4x24xf32> to vector<4x4xf32>
    %28 = vector.extract_strided_slice %25 {offsets = [0, 16], sizes = [4, 4], strides = [1, 1]} : vector<4x24xf32> to vector<4x4xf32>
    %29 = vector.extract_strided_slice %25 {offsets = [0, 20], sizes = [4, 4], strides = [1, 1]} : vector<4x24xf32> to vector<4x4xf32>
    %cst = arith.constant dense<0.000000e+00> : vector<256xf32>
    %30 = vector.multi_reduction <add>, %0, %cst [0] : vector<4x256xf32> to vector<256xf32>
    %31 = vector.shape_cast %30 : vector<256xf32> to vector<1x256xf32>
    %cst_5 = arith.constant 4.000000e+00 : f32
    %32 = vector.broadcast %cst_5 : f32 to vector<1x256xf32>
    %33 = arith.divf %31, %32 : vector<1x256xf32>
    %34 = vector.broadcast %33 : vector<1x256xf32> to vector<4x256xf32>
    %35 = arith.subf %0, %34 : vector<4x256xf32>
    %36 = arith.mulf %35, %35 : vector<4x256xf32>
    %cst_6 = arith.constant dense<0.000000e+00> : vector<256xf32>
    %37 = vector.multi_reduction <add>, %36, %cst_6 [0] : vector<4x256xf32> to vector<256xf32>
    %38 = vector.shape_cast %37 : vector<256xf32> to vector<1x256xf32>
    %cst_7 = arith.constant 4.000000e+00 : f32
    %39 = vector.broadcast %cst_7 : f32 to vector<1x256xf32>
    %40 = arith.divf %38, %39 : vector<1x256xf32>
    %cst_8 = arith.constant 9.99999997E-7 : f32
    %41 = vector.broadcast %cst_8 : f32 to vector<1x256xf32>
    %42 = arith.addf %40, %41 : vector<1x256xf32>
    %43 = math.rsqrt %42 : vector<1x256xf32>
    %44 = vector.broadcast %43 : vector<1x256xf32> to vector<4x256xf32>
    %45 = arith.mulf %35, %44 : vector<4x256xf32>
    %46 = vector.broadcast %4 : vector<4x1xf32> to vector<4x256xf32>
    %47 = arith.mulf %45, %46 : vector<4x256xf32>
    %48 = vector.broadcast %5 : vector<4x1xf32> to vector<4x256xf32>
    %49 = arith.addf %47, %48 : vector<4x256xf32>
    %50 = vector.extract_strided_slice %23 {offsets = [0, 0], sizes = [8, 1], strides = [1, 1]} : vector<8x4xf32> to vector<8x1xf32>
    %51 = vector.extract_strided_slice %49 {offsets = [0, 0], sizes = [1, 256], strides = [1, 1]} : vector<4x256xf32> to vector<1x256xf32>
    %52 = vector.broadcast %50 : vector<8x1xf32> to vector<8x256xf32>
    %53 = vector.broadcast %51 : vector<1x256xf32> to vector<8x256xf32>
    %54 = arith.mulf %52, %53 : vector<8x256xf32>
    %55 = vector.extract_strided_slice %23 {offsets = [0, 1], sizes = [8, 1], strides = [1, 1]} : vector<8x4xf32> to vector<8x1xf32>
    %56 = vector.extract_strided_slice %49 {offsets = [1, 0], sizes = [1, 256], strides = [1, 1]} : vector<4x256xf32> to vector<1x256xf32>
    %57 = vector.broadcast %55 : vector<8x1xf32> to vector<8x256xf32>
    %58 = vector.broadcast %56 : vector<1x256xf32> to vector<8x256xf32>
    %59 = arith.mulf %57, %58 : vector<8x256xf32>
    %60 = arith.addf %54, %59 : vector<8x256xf32>
    %61 = vector.extract_strided_slice %23 {offsets = [0, 2], sizes = [8, 1], strides = [1, 1]} : vector<8x4xf32> to vector<8x1xf32>
    %62 = vector.extract_strided_slice %49 {offsets = [2, 0], sizes = [1, 256], strides = [1, 1]} : vector<4x256xf32> to vector<1x256xf32>
    %63 = vector.broadcast %61 : vector<8x1xf32> to vector<8x256xf32>
    %64 = vector.broadcast %62 : vector<1x256xf32> to vector<8x256xf32>
    %65 = arith.mulf %63, %64 : vector<8x256xf32>
    %66 = arith.addf %60, %65 : vector<8x256xf32>
    %67 = vector.extract_strided_slice %23 {offsets = [0, 3], sizes = [8, 1], strides = [1, 1]} : vector<8x4xf32> to vector<8x1xf32>
    %68 = vector.extract_strided_slice %49 {offsets = [3, 0], sizes = [1, 256], strides = [1, 1]} : vector<4x256xf32> to vector<1x256xf32>
    %69 = vector.broadcast %67 : vector<8x1xf32> to vector<8x256xf32>
    %70 = vector.broadcast %68 : vector<1x256xf32> to vector<8x256xf32>
    %71 = arith.mulf %69, %70 : vector<8x256xf32>
    %72 = arith.addf %66, %71 : vector<8x256xf32>
    %73 = vector.broadcast %15 : vector<8x1xf32> to vector<8x256xf32>
    %74 = arith.addf %72, %73 : vector<8x256xf32>
    %c17_i32 = arith.constant 17 : i32
    %75 = tpu.dynamic_rotate %74 by %c17_i32 dim 1 : vector<8x256xf32>, i32 -> vector<8x256xf32>
    %76 = vector.extract_strided_slice %2 {offsets = [4, 0], sizes = [1, 256], strides = [1, 1]} : vector<9x256xf32> to vector<1x256xf32>
    %77 = vector.broadcast %76 : vector<1x256xf32> to vector<8x256xf32>
    %78 = arith.mulf %75, %77 : vector<8x256xf32>
    %c16_i32 = arith.constant 16 : i32
    %79 = tpu.dynamic_rotate %74 by %c16_i32 dim 1 : vector<8x256xf32>, i32 -> vector<8x256xf32>
    %80 = vector.extract_strided_slice %2 {offsets = [2, 0], sizes = [1, 256], strides = [1, 1]} : vector<9x256xf32> to vector<1x256xf32>
    %81 = vector.broadcast %80 : vector<1x256xf32> to vector<8x256xf32>
    %82 = arith.mulf %79, %81 : vector<8x256xf32>
    %c15_i32 = arith.constant 15 : i32
    %83 = tpu.dynamic_rotate %74 by %c15_i32 dim 1 : vector<8x256xf32>, i32 -> vector<8x256xf32>
    %84 = vector.extract_strided_slice %2 {offsets = [5, 0], sizes = [1, 256], strides = [1, 1]} : vector<9x256xf32> to vector<1x256xf32>
    %85 = vector.broadcast %84 : vector<1x256xf32> to vector<8x256xf32>
    %86 = arith.mulf %83, %85 : vector<8x256xf32>
    %c1_i32 = arith.constant 1 : i32
    %87 = tpu.dynamic_rotate %74 by %c1_i32 dim 1 : vector<8x256xf32>, i32 -> vector<8x256xf32>
    %88 = vector.extract_strided_slice %2 {offsets = [0, 0], sizes = [1, 256], strides = [1, 1]} : vector<9x256xf32> to vector<1x256xf32>
    %89 = vector.broadcast %88 : vector<1x256xf32> to vector<8x256xf32>
    %90 = arith.mulf %87, %89 : vector<8x256xf32>
    %c255_i32 = arith.constant 255 : i32
    %91 = tpu.dynamic_rotate %74 by %c255_i32 dim 1 : vector<8x256xf32>, i32 -> vector<8x256xf32>
    %92 = vector.extract_strided_slice %2 {offsets = [1, 0], sizes = [1, 256], strides = [1, 1]} : vector<9x256xf32> to vector<1x256xf32>
    %93 = vector.broadcast %92 : vector<1x256xf32> to vector<8x256xf32>
    %94 = arith.mulf %91, %93 : vector<8x256xf32>
    %c241_i32 = arith.constant 241 : i32
    %95 = tpu.dynamic_rotate %74 by %c241_i32 dim 1 : vector<8x256xf32>, i32 -> vector<8x256xf32>
    %96 = vector.extract_strided_slice %2 {offsets = [6, 0], sizes = [1, 256], strides = [1, 1]} : vector<9x256xf32> to vector<1x256xf32>
    %97 = vector.broadcast %96 : vector<1x256xf32> to vector<8x256xf32>
    %98 = arith.mulf %95, %97 : vector<8x256xf32>
    %c240_i32 = arith.constant 240 : i32
    %99 = tpu.dynamic_rotate %74 by %c240_i32 dim 1 : vector<8x256xf32>, i32 -> vector<8x256xf32>
    %100 = vector.extract_strided_slice %2 {offsets = [3, 0], sizes = [1, 256], strides = [1, 1]} : vector<9x256xf32> to vector<1x256xf32>
    %101 = vector.broadcast %100 : vector<1x256xf32> to vector<8x256xf32>
    %102 = arith.mulf %99, %101 : vector<8x256xf32>
    %c239_i32 = arith.constant 239 : i32
    %103 = tpu.dynamic_rotate %74 by %c239_i32 dim 1 : vector<8x256xf32>, i32 -> vector<8x256xf32>
    %104 = vector.extract_strided_slice %2 {offsets = [7, 0], sizes = [1, 256], strides = [1, 1]} : vector<9x256xf32> to vector<1x256xf32>
    %105 = vector.broadcast %104 : vector<1x256xf32> to vector<8x256xf32>
    %106 = arith.mulf %103, %105 : vector<8x256xf32>
    %107 = vector.extract_strided_slice %20 {offsets = [0, 0], sizes = [8, 1], strides = [1, 1]} : vector<8x3xf32> to vector<8x1xf32>
    %108 = vector.broadcast %107 : vector<8x1xf32> to vector<8x256xf32>
    %109 = arith.mulf %108, %90 : vector<8x256xf32>
    %110 = vector.extract_strided_slice %20 {offsets = [0, 1], sizes = [8, 1], strides = [1, 1]} : vector<8x3xf32> to vector<8x1xf32>
    %111 = vector.broadcast %110 : vector<8x1xf32> to vector<8x256xf32>
    %112 = arith.mulf %111, %74 : vector<8x256xf32>
    %113 = arith.addf %109, %112 : vector<8x256xf32>
    %114 = vector.extract_strided_slice %20 {offsets = [0, 2], sizes = [8, 1], strides = [1, 1]} : vector<8x3xf32> to vector<8x1xf32>
    %115 = vector.broadcast %114 : vector<8x1xf32> to vector<8x256xf32>
    %116 = arith.mulf %115, %94 : vector<8x256xf32>
    %117 = arith.addf %113, %116 : vector<8x256xf32>
    %118 = vector.broadcast %17 : vector<8x1xf32> to vector<8x256xf32>
    %119 = arith.addf %117, %118 : vector<8x256xf32>
    %120 = vector.extract_strided_slice %21 {offsets = [0, 0], sizes = [8, 1], strides = [1, 1]} : vector<8x9xf32> to vector<8x1xf32>
    %121 = vector.broadcast %120 : vector<8x1xf32> to vector<8x256xf32>
    %122 = arith.mulf %121, %78 : vector<8x256xf32>
    %123 = vector.extract_strided_slice %21 {offsets = [0, 1], sizes = [8, 1], strides = [1, 1]} : vector<8x9xf32> to vector<8x1xf32>
    %124 = vector.broadcast %123 : vector<8x1xf32> to vector<8x256xf32>
    %125 = arith.mulf %124, %82 : vector<8x256xf32>
    %126 = arith.addf %122, %125 : vector<8x256xf32>
    %127 = vector.extract_strided_slice %21 {offsets = [0, 2], sizes = [8, 1], strides = [1, 1]} : vector<8x9xf32> to vector<8x1xf32>
    %128 = vector.broadcast %127 : vector<8x1xf32> to vector<8x256xf32>
    %129 = arith.mulf %128, %86 : vector<8x256xf32>
    %130 = arith.addf %126, %129 : vector<8x256xf32>
    %131 = vector.extract_strided_slice %21 {offsets = [0, 3], sizes = [8, 1], strides = [1, 1]} : vector<8x9xf32> to vector<8x1xf32>
    %132 = vector.broadcast %131 : vector<8x1xf32> to vector<8x256xf32>
    %133 = arith.mulf %132, %90 : vector<8x256xf32>
    %134 = arith.addf %130, %133 : vector<8x256xf32>
    %135 = vector.extract_strided_slice %21 {offsets = [0, 4], sizes = [8, 1], strides = [1, 1]} : vector<8x9xf32> to vector<8x1xf32>
    %136 = vector.broadcast %135 : vector<8x1xf32> to vector<8x256xf32>
    %137 = arith.mulf %136, %74 : vector<8x256xf32>
    %138 = arith.addf %134, %137 : vector<8x256xf32>
    %139 = vector.extract_strided_slice %21 {offsets = [0, 5], sizes = [8, 1], strides = [1, 1]} : vector<8x9xf32> to vector<8x1xf32>
    %140 = vector.broadcast %139 : vector<8x1xf32> to vector<8x256xf32>
    %141 = arith.mulf %140, %94 : vector<8x256xf32>
    %142 = arith.addf %138, %141 : vector<8x256xf32>
    %143 = vector.extract_strided_slice %21 {offsets = [0, 6], sizes = [8, 1], strides = [1, 1]} : vector<8x9xf32> to vector<8x1xf32>
    %144 = vector.broadcast %143 : vector<8x1xf32> to vector<8x256xf32>
    %145 = arith.mulf %144, %98 : vector<8x256xf32>
    %146 = arith.addf %142, %145 : vector<8x256xf32>
    %147 = vector.extract_strided_slice %21 {offsets = [0, 7], sizes = [8, 1], strides = [1, 1]} : vector<8x9xf32> to vector<8x1xf32>
    %148 = vector.broadcast %147 : vector<8x1xf32> to vector<8x256xf32>
    %149 = arith.mulf %148, %102 : vector<8x256xf32>
    %150 = arith.addf %146, %149 : vector<8x256xf32>
    %151 = vector.extract_strided_slice %21 {offsets = [0, 8], sizes = [8, 1], strides = [1, 1]} : vector<8x9xf32> to vector<8x1xf32>
    %152 = vector.broadcast %151 : vector<8x1xf32> to vector<8x256xf32>
    %153 = arith.mulf %152, %106 : vector<8x256xf32>
    %154 = arith.addf %150, %153 : vector<8x256xf32>
    %155 = vector.broadcast %18 : vector<8x1xf32> to vector<8x256xf32>
    %156 = arith.addf %154, %155 : vector<8x256xf32>
    %157 = vector.extract_strided_slice %22 {offsets = [0, 0], sizes = [8, 1], strides = [1, 1]} : vector<8x3xf32> to vector<8x1xf32>
    %158 = vector.broadcast %157 : vector<8x1xf32> to vector<8x256xf32>
    %159 = arith.mulf %158, %82 : vector<8x256xf32>
    %160 = vector.extract_strided_slice %22 {offsets = [0, 1], sizes = [8, 1], strides = [1, 1]} : vector<8x3xf32> to vector<8x1xf32>
    %161 = vector.broadcast %160 : vector<8x1xf32> to vector<8x256xf32>
    %162 = arith.mulf %161, %74 : vector<8x256xf32>
    %163 = arith.addf %159, %162 : vector<8x256xf32>
    %164 = vector.extract_strided_slice %22 {offsets = [0, 2], sizes = [8, 1], strides = [1, 1]} : vector<8x3xf32> to vector<8x1xf32>
    %165 = vector.broadcast %164 : vector<8x1xf32> to vector<8x256xf32>
    %166 = arith.mulf %165, %102 : vector<8x256xf32>
    %167 = arith.addf %163, %166 : vector<8x256xf32>
    %168 = vector.broadcast %19 : vector<8x1xf32> to vector<8x256xf32>
    %169 = arith.addf %167, %168 : vector<8x256xf32>
    %170 = vector.extract_strided_slice %119 {offsets = [0, 0], sizes = [4, 256], strides = [1, 1]} : vector<8x256xf32> to vector<4x256xf32>
    %171 = vector.extract_strided_slice %156 {offsets = [4, 0], sizes = [4, 256], strides = [1, 1]} : vector<8x256xf32> to vector<4x256xf32>
    %172 = arith.mulf %170, %171 : vector<4x256xf32>
    %173 = vector.extract_strided_slice %26 {offsets = [0, 0], sizes = [4, 4], strides = [1, 1]} : vector<4x12xf32> to vector<4x4xf32>
    %174 = vector.extract_strided_slice %173 {offsets = [0, 0], sizes = [4, 1], strides = [1, 1]} : vector<4x4xf32> to vector<4x1xf32>
    %175 = vector.extract_strided_slice %172 {offsets = [0, 0], sizes = [1, 256], strides = [1, 1]} : vector<4x256xf32> to vector<1x256xf32>
    %176 = vector.broadcast %174 : vector<4x1xf32> to vector<4x256xf32>
    %177 = vector.broadcast %175 : vector<1x256xf32> to vector<4x256xf32>
    %178 = arith.mulf %176, %177 : vector<4x256xf32>
    %179 = vector.extract_strided_slice %173 {offsets = [0, 1], sizes = [4, 1], strides = [1, 1]} : vector<4x4xf32> to vector<4x1xf32>
    %180 = vector.extract_strided_slice %172 {offsets = [1, 0], sizes = [1, 256], strides = [1, 1]} : vector<4x256xf32> to vector<1x256xf32>
    %181 = vector.broadcast %179 : vector<4x1xf32> to vector<4x256xf32>
    %182 = vector.broadcast %180 : vector<1x256xf32> to vector<4x256xf32>
    %183 = arith.mulf %181, %182 : vector<4x256xf32>
    %184 = arith.addf %178, %183 : vector<4x256xf32>
    %185 = vector.extract_strided_slice %173 {offsets = [0, 2], sizes = [4, 1], strides = [1, 1]} : vector<4x4xf32> to vector<4x1xf32>
    %186 = vector.extract_strided_slice %172 {offsets = [2, 0], sizes = [1, 256], strides = [1, 1]} : vector<4x256xf32> to vector<1x256xf32>
    %187 = vector.broadcast %185 : vector<4x1xf32> to vector<4x256xf32>
    %188 = vector.broadcast %186 : vector<1x256xf32> to vector<4x256xf32>
    %189 = arith.mulf %187, %188 : vector<4x256xf32>
    %190 = arith.addf %184, %189 : vector<4x256xf32>
    %191 = vector.extract_strided_slice %173 {offsets = [0, 3], sizes = [4, 1], strides = [1, 1]} : vector<4x4xf32> to vector<4x1xf32>
    %192 = vector.extract_strided_slice %172 {offsets = [3, 0], sizes = [1, 256], strides = [1, 1]} : vector<4x256xf32> to vector<1x256xf32>
    %193 = vector.broadcast %191 : vector<4x1xf32> to vector<4x256xf32>
    %194 = vector.broadcast %192 : vector<1x256xf32> to vector<4x256xf32>
    %195 = arith.mulf %193, %194 : vector<4x256xf32>
    %196 = arith.addf %190, %195 : vector<4x256xf32>
    %197 = vector.extract_strided_slice %119 {offsets = [4, 0], sizes = [4, 256], strides = [1, 1]} : vector<8x256xf32> to vector<4x256xf32>
    %198 = vector.extract_strided_slice %169 {offsets = [0, 0], sizes = [4, 256], strides = [1, 1]} : vector<8x256xf32> to vector<4x256xf32>
    %199 = arith.mulf %197, %198 : vector<4x256xf32>
    %200 = vector.extract_strided_slice %26 {offsets = [0, 4], sizes = [4, 4], strides = [1, 1]} : vector<4x12xf32> to vector<4x4xf32>
    %201 = vector.extract_strided_slice %200 {offsets = [0, 0], sizes = [4, 1], strides = [1, 1]} : vector<4x4xf32> to vector<4x1xf32>
    %202 = vector.extract_strided_slice %199 {offsets = [0, 0], sizes = [1, 256], strides = [1, 1]} : vector<4x256xf32> to vector<1x256xf32>
    %203 = vector.broadcast %201 : vector<4x1xf32> to vector<4x256xf32>
    %204 = vector.broadcast %202 : vector<1x256xf32> to vector<4x256xf32>
    %205 = arith.mulf %203, %204 : vector<4x256xf32>
    %206 = vector.extract_strided_slice %200 {offsets = [0, 1], sizes = [4, 1], strides = [1, 1]} : vector<4x4xf32> to vector<4x1xf32>
    %207 = vector.extract_strided_slice %199 {offsets = [1, 0], sizes = [1, 256], strides = [1, 1]} : vector<4x256xf32> to vector<1x256xf32>
    %208 = vector.broadcast %206 : vector<4x1xf32> to vector<4x256xf32>
    %209 = vector.broadcast %207 : vector<1x256xf32> to vector<4x256xf32>
    %210 = arith.mulf %208, %209 : vector<4x256xf32>
    %211 = arith.addf %205, %210 : vector<4x256xf32>
    %212 = vector.extract_strided_slice %200 {offsets = [0, 2], sizes = [4, 1], strides = [1, 1]} : vector<4x4xf32> to vector<4x1xf32>
    %213 = vector.extract_strided_slice %199 {offsets = [2, 0], sizes = [1, 256], strides = [1, 1]} : vector<4x256xf32> to vector<1x256xf32>
    %214 = vector.broadcast %212 : vector<4x1xf32> to vector<4x256xf32>
    %215 = vector.broadcast %213 : vector<1x256xf32> to vector<4x256xf32>
    %216 = arith.mulf %214, %215 : vector<4x256xf32>
    %217 = arith.addf %211, %216 : vector<4x256xf32>
    %218 = vector.extract_strided_slice %200 {offsets = [0, 3], sizes = [4, 1], strides = [1, 1]} : vector<4x4xf32> to vector<4x1xf32>
    %219 = vector.extract_strided_slice %199 {offsets = [3, 0], sizes = [1, 256], strides = [1, 1]} : vector<4x256xf32> to vector<1x256xf32>
    %220 = vector.broadcast %218 : vector<4x1xf32> to vector<4x256xf32>
    %221 = vector.broadcast %219 : vector<1x256xf32> to vector<4x256xf32>
    %222 = arith.mulf %220, %221 : vector<4x256xf32>
    %223 = arith.addf %217, %222 : vector<4x256xf32>
    %224 = arith.addf %196, %223 : vector<4x256xf32>
    %225 = vector.extract_strided_slice %156 {offsets = [0, 0], sizes = [4, 256], strides = [1, 1]} : vector<8x256xf32> to vector<4x256xf32>
    %226 = vector.extract_strided_slice %169 {offsets = [4, 0], sizes = [4, 256], strides = [1, 1]} : vector<8x256xf32> to vector<4x256xf32>
    %227 = arith.mulf %225, %226 : vector<4x256xf32>
    %228 = vector.extract_strided_slice %26 {offsets = [0, 8], sizes = [4, 4], strides = [1, 1]} : vector<4x12xf32> to vector<4x4xf32>
    %229 = vector.extract_strided_slice %228 {offsets = [0, 0], sizes = [4, 1], strides = [1, 1]} : vector<4x4xf32> to vector<4x1xf32>
    %230 = vector.extract_strided_slice %227 {offsets = [0, 0], sizes = [1, 256], strides = [1, 1]} : vector<4x256xf32> to vector<1x256xf32>
    %231 = vector.broadcast %229 : vector<4x1xf32> to vector<4x256xf32>
    %232 = vector.broadcast %230 : vector<1x256xf32> to vector<4x256xf32>
    %233 = arith.mulf %231, %232 : vector<4x256xf32>
    %234 = vector.extract_strided_slice %228 {offsets = [0, 1], sizes = [4, 1], strides = [1, 1]} : vector<4x4xf32> to vector<4x1xf32>
    %235 = vector.extract_strided_slice %227 {offsets = [1, 0], sizes = [1, 256], strides = [1, 1]} : vector<4x256xf32> to vector<1x256xf32>
    %236 = vector.broadcast %234 : vector<4x1xf32> to vector<4x256xf32>
    %237 = vector.broadcast %235 : vector<1x256xf32> to vector<4x256xf32>
    %238 = arith.mulf %236, %237 : vector<4x256xf32>
    %239 = arith.addf %233, %238 : vector<4x256xf32>
    %240 = vector.extract_strided_slice %228 {offsets = [0, 2], sizes = [4, 1], strides = [1, 1]} : vector<4x4xf32> to vector<4x1xf32>
    %241 = vector.extract_strided_slice %227 {offsets = [2, 0], sizes = [1, 256], strides = [1, 1]} : vector<4x256xf32> to vector<1x256xf32>
    %242 = vector.broadcast %240 : vector<4x1xf32> to vector<4x256xf32>
    %243 = vector.broadcast %241 : vector<1x256xf32> to vector<4x256xf32>
    %244 = arith.mulf %242, %243 : vector<4x256xf32>
    %245 = arith.addf %239, %244 : vector<4x256xf32>
    %246 = vector.extract_strided_slice %228 {offsets = [0, 3], sizes = [4, 1], strides = [1, 1]} : vector<4x4xf32> to vector<4x1xf32>
    %247 = vector.extract_strided_slice %227 {offsets = [3, 0], sizes = [1, 256], strides = [1, 1]} : vector<4x256xf32> to vector<1x256xf32>
    %248 = vector.broadcast %246 : vector<4x1xf32> to vector<4x256xf32>
    %249 = vector.broadcast %247 : vector<1x256xf32> to vector<4x256xf32>
    %250 = arith.mulf %248, %249 : vector<4x256xf32>
    %251 = arith.addf %245, %250 : vector<4x256xf32>
    %252 = arith.addf %224, %251 : vector<4x256xf32>
    %253 = vector.broadcast %8 : vector<4x1xf32> to vector<4x256xf32>
    %254 = arith.addf %252, %253 : vector<4x256xf32>
    %cst_9 = arith.constant dense<0.000000e+00> : vector<4xf32>
    %255 = vector.multi_reduction <add>, %254, %cst_9 [1] : vector<4x256xf32> to vector<4xf32>
    %256 = vector.shape_cast %255 : vector<4xf32> to vector<4x1xf32>
    %cst_10 = arith.constant 2.560000e+02 : f32
    %257 = vector.broadcast %cst_10 : f32 to vector<4x1xf32>
    %258 = arith.divf %256, %257 : vector<4x1xf32>
    %259 = vector.extract_strided_slice %27 {offsets = [0, 0], sizes = [4, 1], strides = [1, 1]} : vector<4x4xf32> to vector<4x1xf32>
    %260 = vector.extract_strided_slice %258 {offsets = [0, 0], sizes = [1, 1], strides = [1, 1]} : vector<4x1xf32> to vector<1x1xf32>
    %261 = vector.broadcast %260 : vector<1x1xf32> to vector<4x1xf32>
    %262 = arith.mulf %259, %261 : vector<4x1xf32>
    %263 = vector.extract_strided_slice %27 {offsets = [0, 1], sizes = [4, 1], strides = [1, 1]} : vector<4x4xf32> to vector<4x1xf32>
    %264 = vector.extract_strided_slice %258 {offsets = [1, 0], sizes = [1, 1], strides = [1, 1]} : vector<4x1xf32> to vector<1x1xf32>
    %265 = vector.broadcast %264 : vector<1x1xf32> to vector<4x1xf32>
    %266 = arith.mulf %263, %265 : vector<4x1xf32>
    %267 = arith.addf %262, %266 : vector<4x1xf32>
    %268 = vector.extract_strided_slice %27 {offsets = [0, 2], sizes = [4, 1], strides = [1, 1]} : vector<4x4xf32> to vector<4x1xf32>
    %269 = vector.extract_strided_slice %258 {offsets = [2, 0], sizes = [1, 1], strides = [1, 1]} : vector<4x1xf32> to vector<1x1xf32>
    %270 = vector.broadcast %269 : vector<1x1xf32> to vector<4x1xf32>
    %271 = arith.mulf %268, %270 : vector<4x1xf32>
    %272 = arith.addf %267, %271 : vector<4x1xf32>
    %273 = vector.extract_strided_slice %27 {offsets = [0, 3], sizes = [4, 1], strides = [1, 1]} : vector<4x4xf32> to vector<4x1xf32>
    %274 = vector.extract_strided_slice %258 {offsets = [3, 0], sizes = [1, 1], strides = [1, 1]} : vector<4x1xf32> to vector<1x1xf32>
    %275 = vector.broadcast %274 : vector<1x1xf32> to vector<4x1xf32>
    %276 = arith.mulf %273, %275 : vector<4x1xf32>
    %277 = arith.addf %272, %276 : vector<4x1xf32>
    %278 = arith.addf %277, %9 : vector<4x1xf32>
    %279 = vector.broadcast %278 : vector<4x1xf32> to vector<4x256xf32>
    %280 = arith.mulf %254, %279 : vector<4x256xf32>
    %281 = vector.extract_strided_slice %28 {offsets = [0, 0], sizes = [4, 1], strides = [1, 1]} : vector<4x4xf32> to vector<4x1xf32>
    %282 = vector.extract_strided_slice %280 {offsets = [0, 0], sizes = [1, 256], strides = [1, 1]} : vector<4x256xf32> to vector<1x256xf32>
    %283 = vector.broadcast %281 : vector<4x1xf32> to vector<4x256xf32>
    %284 = vector.broadcast %282 : vector<1x256xf32> to vector<4x256xf32>
    %285 = arith.mulf %283, %284 : vector<4x256xf32>
    %286 = vector.extract_strided_slice %28 {offsets = [0, 1], sizes = [4, 1], strides = [1, 1]} : vector<4x4xf32> to vector<4x1xf32>
    %287 = vector.extract_strided_slice %280 {offsets = [1, 0], sizes = [1, 256], strides = [1, 1]} : vector<4x256xf32> to vector<1x256xf32>
    %288 = vector.broadcast %286 : vector<4x1xf32> to vector<4x256xf32>
    %289 = vector.broadcast %287 : vector<1x256xf32> to vector<4x256xf32>
    %290 = arith.mulf %288, %289 : vector<4x256xf32>
    %291 = arith.addf %285, %290 : vector<4x256xf32>
    %292 = vector.extract_strided_slice %28 {offsets = [0, 2], sizes = [4, 1], strides = [1, 1]} : vector<4x4xf32> to vector<4x1xf32>
    %293 = vector.extract_strided_slice %280 {offsets = [2, 0], sizes = [1, 256], strides = [1, 1]} : vector<4x256xf32> to vector<1x256xf32>
    %294 = vector.broadcast %292 : vector<4x1xf32> to vector<4x256xf32>
    %295 = vector.broadcast %293 : vector<1x256xf32> to vector<4x256xf32>
    %296 = arith.mulf %294, %295 : vector<4x256xf32>
    %297 = arith.addf %291, %296 : vector<4x256xf32>
    %298 = vector.extract_strided_slice %28 {offsets = [0, 3], sizes = [4, 1], strides = [1, 1]} : vector<4x4xf32> to vector<4x1xf32>
    %299 = vector.extract_strided_slice %280 {offsets = [3, 0], sizes = [1, 256], strides = [1, 1]} : vector<4x256xf32> to vector<1x256xf32>
    %300 = vector.broadcast %298 : vector<4x1xf32> to vector<4x256xf32>
    %301 = vector.broadcast %299 : vector<1x256xf32> to vector<4x256xf32>
    %302 = arith.mulf %300, %301 : vector<4x256xf32>
    %303 = arith.addf %297, %302 : vector<4x256xf32>
    %304 = vector.broadcast %10 : vector<4x1xf32> to vector<4x256xf32>
    %305 = arith.addf %303, %304 : vector<4x256xf32>
    %306 = vector.broadcast %12 : vector<4x1xf32> to vector<4x256xf32>
    %307 = arith.mulf %305, %306 : vector<4x256xf32>
    %308 = arith.addf %0, %307 : vector<4x256xf32>
    %cst_11 = arith.constant dense<0.000000e+00> : vector<256xf32>
    %309 = vector.multi_reduction <add>, %308, %cst_11 [0] : vector<4x256xf32> to vector<256xf32>
    %310 = vector.shape_cast %309 : vector<256xf32> to vector<1x256xf32>
    %cst_12 = arith.constant 4.000000e+00 : f32
    %311 = vector.broadcast %cst_12 : f32 to vector<1x256xf32>
    %312 = arith.divf %310, %311 : vector<1x256xf32>
    %313 = vector.broadcast %312 : vector<1x256xf32> to vector<4x256xf32>
    %314 = arith.subf %308, %313 : vector<4x256xf32>
    %315 = arith.mulf %314, %314 : vector<4x256xf32>
    %cst_13 = arith.constant dense<0.000000e+00> : vector<256xf32>
    %316 = vector.multi_reduction <add>, %315, %cst_13 [0] : vector<4x256xf32> to vector<256xf32>
    %317 = vector.shape_cast %316 : vector<256xf32> to vector<1x256xf32>
    %cst_14 = arith.constant 4.000000e+00 : f32
    %318 = vector.broadcast %cst_14 : f32 to vector<1x256xf32>
    %319 = arith.divf %317, %318 : vector<1x256xf32>
    %cst_15 = arith.constant 9.99999997E-7 : f32
    %320 = vector.broadcast %cst_15 : f32 to vector<1x256xf32>
    %321 = arith.addf %319, %320 : vector<1x256xf32>
    %322 = math.rsqrt %321 : vector<1x256xf32>
    %323 = vector.broadcast %322 : vector<1x256xf32> to vector<4x256xf32>
    %324 = arith.mulf %314, %323 : vector<4x256xf32>
    %325 = vector.broadcast %6 : vector<4x1xf32> to vector<4x256xf32>
    %326 = arith.mulf %324, %325 : vector<4x256xf32>
    %327 = vector.broadcast %7 : vector<4x1xf32> to vector<4x256xf32>
    %328 = arith.addf %326, %327 : vector<4x256xf32>
    %329 = vector.extract_strided_slice %24 {offsets = [0, 0], sizes = [8, 1], strides = [1, 1]} : vector<8x4xf32> to vector<8x1xf32>
    %330 = vector.extract_strided_slice %328 {offsets = [0, 0], sizes = [1, 256], strides = [1, 1]} : vector<4x256xf32> to vector<1x256xf32>
    %331 = vector.broadcast %329 : vector<8x1xf32> to vector<8x256xf32>
    %332 = vector.broadcast %330 : vector<1x256xf32> to vector<8x256xf32>
    %333 = arith.mulf %331, %332 : vector<8x256xf32>
    %334 = vector.extract_strided_slice %24 {offsets = [0, 1], sizes = [8, 1], strides = [1, 1]} : vector<8x4xf32> to vector<8x1xf32>
    %335 = vector.extract_strided_slice %328 {offsets = [1, 0], sizes = [1, 256], strides = [1, 1]} : vector<4x256xf32> to vector<1x256xf32>
    %336 = vector.broadcast %334 : vector<8x1xf32> to vector<8x256xf32>
    %337 = vector.broadcast %335 : vector<1x256xf32> to vector<8x256xf32>
    %338 = arith.mulf %336, %337 : vector<8x256xf32>
    %339 = arith.addf %333, %338 : vector<8x256xf32>
    %340 = vector.extract_strided_slice %24 {offsets = [0, 2], sizes = [8, 1], strides = [1, 1]} : vector<8x4xf32> to vector<8x1xf32>
    %341 = vector.extract_strided_slice %328 {offsets = [2, 0], sizes = [1, 256], strides = [1, 1]} : vector<4x256xf32> to vector<1x256xf32>
    %342 = vector.broadcast %340 : vector<8x1xf32> to vector<8x256xf32>
    %343 = vector.broadcast %341 : vector<1x256xf32> to vector<8x256xf32>
    %344 = arith.mulf %342, %343 : vector<8x256xf32>
    %345 = arith.addf %339, %344 : vector<8x256xf32>
    %346 = vector.extract_strided_slice %24 {offsets = [0, 3], sizes = [8, 1], strides = [1, 1]} : vector<8x4xf32> to vector<8x1xf32>
    %347 = vector.extract_strided_slice %328 {offsets = [3, 0], sizes = [1, 256], strides = [1, 1]} : vector<4x256xf32> to vector<1x256xf32>
    %348 = vector.broadcast %346 : vector<8x1xf32> to vector<8x256xf32>
    %349 = vector.broadcast %347 : vector<1x256xf32> to vector<8x256xf32>
    %350 = arith.mulf %348, %349 : vector<8x256xf32>
    %351 = arith.addf %345, %350 : vector<8x256xf32>
    %352 = vector.broadcast %16 : vector<8x1xf32> to vector<8x256xf32>
    %353 = arith.addf %351, %352 : vector<8x256xf32>
    %354 = vector.extract_strided_slice %353 {offsets = [0, 0], sizes = [4, 256], strides = [1, 1]} : vector<8x256xf32> to vector<4x256xf32>
    %355 = vector.extract_strided_slice %353 {offsets = [4, 0], sizes = [4, 256], strides = [1, 1]} : vector<8x256xf32> to vector<4x256xf32>
    %356 = arith.mulf %354, %355 : vector<4x256xf32>
    %357 = vector.extract_strided_slice %29 {offsets = [0, 0], sizes = [4, 1], strides = [1, 1]} : vector<4x4xf32> to vector<4x1xf32>
    %358 = vector.extract_strided_slice %356 {offsets = [0, 0], sizes = [1, 256], strides = [1, 1]} : vector<4x256xf32> to vector<1x256xf32>
    %359 = vector.broadcast %357 : vector<4x1xf32> to vector<4x256xf32>
    %360 = vector.broadcast %358 : vector<1x256xf32> to vector<4x256xf32>
    %361 = arith.mulf %359, %360 : vector<4x256xf32>
    %362 = vector.extract_strided_slice %29 {offsets = [0, 1], sizes = [4, 1], strides = [1, 1]} : vector<4x4xf32> to vector<4x1xf32>
    %363 = vector.extract_strided_slice %356 {offsets = [1, 0], sizes = [1, 256], strides = [1, 1]} : vector<4x256xf32> to vector<1x256xf32>
    %364 = vector.broadcast %362 : vector<4x1xf32> to vector<4x256xf32>
    %365 = vector.broadcast %363 : vector<1x256xf32> to vector<4x256xf32>
    %366 = arith.mulf %364, %365 : vector<4x256xf32>
    %367 = arith.addf %361, %366 : vector<4x256xf32>
    %368 = vector.extract_strided_slice %29 {offsets = [0, 2], sizes = [4, 1], strides = [1, 1]} : vector<4x4xf32> to vector<4x1xf32>
    %369 = vector.extract_strided_slice %356 {offsets = [2, 0], sizes = [1, 256], strides = [1, 1]} : vector<4x256xf32> to vector<1x256xf32>
    %370 = vector.broadcast %368 : vector<4x1xf32> to vector<4x256xf32>
    %371 = vector.broadcast %369 : vector<1x256xf32> to vector<4x256xf32>
    %372 = arith.mulf %370, %371 : vector<4x256xf32>
    %373 = arith.addf %367, %372 : vector<4x256xf32>
    %374 = vector.extract_strided_slice %29 {offsets = [0, 3], sizes = [4, 1], strides = [1, 1]} : vector<4x4xf32> to vector<4x1xf32>
    %375 = vector.extract_strided_slice %356 {offsets = [3, 0], sizes = [1, 256], strides = [1, 1]} : vector<4x256xf32> to vector<1x256xf32>
    %376 = vector.broadcast %374 : vector<4x1xf32> to vector<4x256xf32>
    %377 = vector.broadcast %375 : vector<1x256xf32> to vector<4x256xf32>
    %378 = arith.mulf %376, %377 : vector<4x256xf32>
    %379 = arith.addf %373, %378 : vector<4x256xf32>
    %380 = vector.broadcast %11 : vector<4x1xf32> to vector<4x256xf32>
    %381 = arith.addf %379, %380 : vector<4x256xf32>
    %382 = vector.broadcast %13 : vector<4x1xf32> to vector<4x256xf32>
    %383 = arith.mulf %381, %382 : vector<4x256xf32>
    %384 = arith.addf %308, %383 : vector<4x256xf32>
    %c0_16 = arith.constant 0 : index
    %c0_17 = arith.constant 0 : index
    %385 = vector.load %arg4[%c0_16, %c0_17] : memref<4x256xf32, #tpu.memory_space<vmem>>, vector<4x256xf32>
    tpu.vector_store %arg4[%c0_16, %c0_17], %384 {strides = array<i32>} : memref<4x256xf32, #tpu.memory_space<vmem>>, vector<4x256xf32>,
    return
  }
  func.func @transform_0(%arg0: i32) -> (i32, i32) {
    %c0_i32 = arith.constant 0 : i32
    %c0_i32_0 = arith.constant 0 : i32
    return %c0_i32, %arg0 : i32, i32
  }
  func.func @transform_1(%arg0: i32) -> (i32, i32) {
    %c0_i32 = arith.constant 0 : i32
    %c0_i32_0 = arith.constant 0 : i32
    %c0_i32_1 = arith.constant 0 : i32
    return %c0_i32, %c0_i32_0 : i32, i32
  }
  func.func @transform_2(%arg0: i32) -> (i32, i32) {
    %c0_i32 = arith.constant 0 : i32
    %c0_i32_0 = arith.constant 0 : i32
    %c0_i32_1 = arith.constant 0 : i32
    return %c0_i32, %c0_i32_0 : i32, i32
  }
  func.func @transform_3(%arg0: i32) -> (i32, i32) {
    %c0_i32 = arith.constant 0 : i32
    %c0_i32_0 = arith.constant 0 : i32
    return %c0_i32, %arg0 : i32, i32
  }
}

</mosaic_0001>

<llo_original>
// kernel: tpu_custom_call.1
$region0: #{tpu_custom_call.1}
  #allocation0 [shape = 'u32[]', space=smem, size = 0x4, offset = 0x4, fixed_abs, tag = 'smem constant byte address 0x4 - core index']
  #allocation1 [shape = 'u32[144,128]{1,0:T(1,128)}', space=vmem, size = 0x12000, scoped, tag = 'internal scratch']
  %s0 = inlined_call_operand.hbm [shape: f32[4,512], index: 0, kind: input, shape index: {}]
  %s1 = inlined_call_operand.hbm [shape: f32[8,62], index: 1, kind: input, shape index: {}]
  %s2 = inlined_call_operand.hbm [shape: f32[9,256], index: 2, kind: input, shape index: {}]
  %s3 = inlined_call_operand.hbm [shape: f32[4,512], index: 3, kind: output, shape index: {}]
  %s4 = sld [smem:[#allocation0]]
  $region57: #{tpu_custom_call.1} parent=0
    _
  %s6 = ssub.s32 1, %s4
  %s7 = scalar_select 0, %s6, %s4
  $region1: #{tpu_custom_call.1} parent=0
    #allocation2 [shape = 'u8[8192]{0}', space=vmem, size = 0x2000, scoped, tag = 'input window, operand 0']
    #allocation3 [shape = 's32[2]{0}', space=sflag, size = 0x8, scoped, tag = 'scoped memory for tpu_custom_call.1']
    #allocation4 [shape = 's32[2]{0}', space=sflag, size = 0x8, scoped, tag = 'scoped memory for tpu_custom_call.1']
    #allocation5 [shape = 'u8[4096]{0}', space=vmem, size = 0x1000, scoped, tag = 'input window, operand 1, single buffered']
    #allocation6 [shape = 's32[1]{0}', space=sflag, size = 0x4, scoped, tag = 'scoped memory for tpu_custom_call.1']
    #allocation7 [shape = 'u8[16384]{0}', space=vmem, size = 0x4000, scoped, tag = 'input window, operand 2, single buffered']
    #allocation8 [shape = 'u8[8192]{0}', space=vmem, size = 0x2000, scoped, tag = 'output window, operand 0']
    %8 = vsyncpa [#allocation3], 0
    %s9 = scalar_lea.sflag [#allocation3], 1
    %10 = vsyncpa %s9, 0
    %11 = vsyncpa [#allocation6], 0
    %12 = vsyncpa [#allocation4], 0
    %s13 = scalar_lea.sflag [#allocation4], 1
    %14 = vsyncpa %s13, 0
    loop: start=0, step=1, limit=4
    $region2: #{tpu_custom_call.1} parent=1 // loop_pre_header
      _
    $region3: #{tpu_custom_call.1} parent=1 // loop_header
      %s16 = sphi 0, %s20
      %p17 = scmp.ge.s32.totalorder %s16, 4
      %s26 = sphi 0, %s28
      %s29 = sphi 0, %s26
      %s30 = sphi 0, %s29
      %s46 = sphi 0, %s30
      %s50 = sphi 0, %s50
      %s52 = sphi 0, %s50
      %s53 = sphi 0, %s52
      %s67 = sphi 0, %s53
      %s71 = sphi 0, %s71
      %s73 = sphi 0, %s71
      %s74 = sphi 0, %s73
      %s88 = sphi 0, %s74
      %s94 = sphi 0, %s96
      %s97 = sphi 0, %s94
      %s98 = sphi 0, %s97
      %s114 = sphi 0, %s98
    $region4: #{tpu_custom_call.1} parent=1 // loop_header_branch
      %19 = sbr.rel (%p17) target = $region8
    $region5: #{tpu_custom_call.1} parent=1 // loop_body
      %s21 = ssub.s32 %s16, 1
      %s22 = ssub.s32 %s16, 2
      %s23 = sadd.s32 %s16, 1
      %s24 = ssub.s32 %s16, %s23
      %p25 = scmp.eq.s32.totalorder %s24, 0
      %s27 = sadd.s32 %s26, 1
      %s28 = scalar_select %p25, %s26, %s27
      %p31 = pneg %p25
      %p32 = scmp.eq.s32.totalorder %s16, 1
      %p33 = por %p31, %p32
      %p34 = scmp.ne.s32.totalorder %s26, %s29
      %p35 = scmp.eq.s32.totalorder %s16, 0
      %p36 = por %p34, %p35
      %p37 = scmp.ne.s32.totalorder %s26, %s29
      %p38 = scmp.eq.s32.totalorder %s21, 1
      %p39 = por %p37, %p38
      %p40 = scmp.ne.s32.totalorder %s29, %s30
      %p41 = scmp.eq.s32.totalorder %s21, 0
      %p42 = por %p40, %p41
      %p43 = scmp.ne.s32.totalorder %s29, %s30
      %p44 = scmp.eq.s32.totalorder %s22, 1
      %p45 = por %p43, %p44
      %p47 = scmp.ne.s32.totalorder %s30, %s46
      %p48 = scmp.eq.s32.totalorder %s22, 0
      %p49 = por %p47, %p48
      %s51 = sadd.s32 %s50, 1
      %p54 = scmp.eq.s32.totalorder %s16, 1
      %p55 = scmp.ne.s32.totalorder %s50, %s52
      %p56 = scmp.eq.s32.totalorder %s16, 0
      %p57 = por %p55, %p56
      %p58 = scmp.ne.s32.totalorder %s50, %s52
      %p59 = scmp.eq.s32.totalorder %s21, 1
      %p60 = por %p58, %p59
      %p61 = scmp.ne.s32.totalorder %s52, %s53
      %p62 = scmp.eq.s32.totalorder %s21, 0
      %p63 = por %p61, %p62
      %p64 = scmp.ne.s32.totalorder %s52, %s53
      %p65 = scmp.eq.s32.totalorder %s22, 1
      %p66 = por %p64, %p65
      %p68 = scmp.ne.s32.totalorder %s53, %s67
      %p69 = scmp.eq.s32.totalorder %s22, 0
      %p70 = por %p68, %p69
      %s72 = sadd.s32 %s71, 1
      %p75 = scmp.eq.s32.totalorder %s16, 1
      %p76 = scmp.ne.s32.totalorder %s71, %s73
      %p77 = scmp.eq.s32.totalorder %s16, 0
      %p78 = por %p76, %p77
      %p79 = scmp.ne.s32.totalorder %s71, %s73
      %p80 = scmp.eq.s32.totalorder %s21, 1
      %p81 = por %p79, %p80
      %p82 = scmp.ne.s32.totalorder %s73, %s74
      %p83 = scmp.eq.s32.totalorder %s21, 0
      %p84 = por %p82, %p83
      %p85 = scmp.ne.s32.totalorder %s73, %s74
      %p86 = scmp.eq.s32.totalorder %s22, 1
      %p87 = por %p85, %p86
      %p89 = scmp.ne.s32.totalorder %s74, %s88
      %p90 = scmp.eq.s32.totalorder %s22, 0
      %p91 = por %p89, %p90
      %s92 = ssub.s32 %s16, %s23
      %p93 = scmp.eq.s32.totalorder %s92, 0
      %s95 = sadd.s32 %s94, 1
      %s96 = scalar_select %p93, %s94, %s95
      %p99 = pneg %p93
      %p100 = scmp.eq.s32.totalorder %s16, 1
      %p101 = por %p99, %p100
      %p102 = scmp.ne.s32.totalorder %s94, %s97
      %p103 = scmp.eq.s32.totalorder %s16, 0
      %p104 = por %p102, %p103
      %p105 = scmp.ne.s32.totalorder %s94, %s97
      %p106 = scmp.eq.s32.totalorder %s21, 1
      %p107 = por %p105, %p106
      %p108 = scmp.ne.s32.totalorder %s97, %s98
      %p109 = scmp.eq.s32.totalorder %s21, 0
      %p110 = por %p108, %p109
      %p111 = scmp.ne.s32.totalorder %s97, %s98
      %p112 = scmp.eq.s32.totalorder %s22, 1
      %p113 = por %p111, %p112
      %p115 = scmp.ne.s32.totalorder %s98, %s114
      %p116 = scmp.eq.s32.totalorder %s22, 0
      %p117 = por %p115, %p116
      %p118 = scmp.le.s32.totalorder 1, %s16
      %p119 = scmp.lt.s32.totalorder %s16, 3
      %p120 = pnand %p118, %p119
      %p121 = pneg %p120
      // Predicated region
      $region9: #{tpu_custom_call.1} parent=5 // pred_check
        _
      $region10: #{tpu_custom_call.1} parent=5 // pred_check_branch
        %123 = sbr.rel (%p120) target = $region12
      $region11: #{tpu_custom_call.1} parent=5 // pred_region
        %s124 = ssub.s32 %s16, 1
        // Predicated region
        $region13: #{tpu_custom_call.1} parent=11 // pred_check
          %p125 = pneg %p63
        $region14: #{tpu_custom_call.1} parent=11 // pred_check_branch
          %127 = sbr.rel (%p125) target = $region16
        $region15: #{tpu_custom_call.1} parent=11 // pred_region
          %s129 = ssub.s32 128, 128
          %130 = vsyncadd [#allocation6], %s129
          %s132 = sshll.u32 [#allocation5], 4
          %s133 = int_to_ptr.vmem [resolvable:$true] %s132
          %135 = dma.hbm_to_vmem [thread:$0]  %s1, 128, %s133, [#allocation6]
        $region16: #{tpu_custom_call.1} parent=11 // pred_fallthru
          _
        // Predicated region
        $region17: #{tpu_custom_call.1} parent=11 // pred_check
          %p136 = pneg %p84
        $region18: #{tpu_custom_call.1} parent=11 // pred_check_branch
          %138 = sbr.rel (%p136) target = $region20
        $region19: #{tpu_custom_call.1} parent=11 // pred_region
          %s140 = ssub.s32 512, 512
          %141 = vsyncadd [#allocation6], %s140
          %s142 = sshll.u32 [#allocation7], 4
          %s143 = int_to_ptr.vmem [resolvable:$true] %s142
          %148 = dma.hbm_to_vmem [thread:$0]  %s2, 512, %s143, [#allocation6], 256, 256, 16
        $region20: #{tpu_custom_call.1} parent=11 // pred_fallthru
          _
      $region12: #{tpu_custom_call.1} parent=5 // pred_fallthru
        _
      %p149 = scmp.lt.s32.totalorder %s16, 2
      // Predicated region
      $region21: #{tpu_custom_call.1} parent=5 // pred_check
        %p150 = pneg %p149
      $region22: #{tpu_custom_call.1} parent=5 // pred_check_branch
        %152 = sbr.rel (%p150) target = $region24
      $region23: #{tpu_custom_call.1} parent=5 // pred_region
        // Predicated region
        $region25: #{tpu_custom_call.1} parent=23 // pred_check
          %p153 = pneg %p36
        $region26: #{tpu_custom_call.1} parent=23 // pred_check_branch
          %155 = sbr.rel (%p153) target = $region28
        $region27: #{tpu_custom_call.1} parent=23 // pred_region
          %s156 = sand.u32 %s26, 1
          %s157 = scalar_lea.sflag [#allocation3], %s156
          %s158 = sand.u32 %s26, 1
          %s159 = smul.addr %s158, 8
          %s160 = scalar_lea.vmem [#allocation2], %s159
          %s161 = smul.u32 2, %s16
          %s163 = ssub.s32 128, 128
          %164 = vsyncadd %s157, %s163
          %s165 = smul.addr %s161, 64
          %s166 = scalar_lea.hbm %s0, %s165
          %s168 = sshll.u32 %s160, 4
          %s169 = int_to_ptr.vmem [resolvable:$true] %s168
          %171 = dma.hbm_to_vmem [thread:$0]  %s166, 128, %s169, %s157
        $region28: #{tpu_custom_call.1} parent=23 // pred_fallthru
          _
      $region24: #{tpu_custom_call.1} parent=5 // pred_fallthru
        _
      %p172 = scmp.le.s32.totalorder 1, %s16
      %p173 = scmp.lt.s32.totalorder %s16, 3
      %p174 = pnand %p172, %p173
      %p175 = pneg %p174
      // Predicated region
      $region29: #{tpu_custom_call.1} parent=5 // pred_check
        _
      $region30: #{tpu_custom_call.1} parent=5 // pred_check_branch
        %177 = sbr.rel (%p174) target = $region32
      $region31: #{tpu_custom_call.1} parent=5 // pred_region
        %s178 = ssub.s32 %s16, 1
        %s179 = sand.u32 %s29, 1
        %s180 = scalar_lea.sflag [#allocation3], %s179
        %s181 = sand.u32 %s29, 1
        %s182 = smul.addr %s181, 8
        %s183 = scalar_lea.vmem [#allocation2], %s182
        // Predicated region
        $region33: #{tpu_custom_call.1} parent=31 // pred_check
          %p184 = pneg %p42
        $region34: #{tpu_custom_call.1} parent=31 // pred_check_branch
          %186 = sbr.rel (%p184) target = $region36
        $region35: #{tpu_custom_call.1} parent=31 // pred_region
          %187 = dma.done %s180, 128
        $region36: #{tpu_custom_call.1} parent=31 // pred_fallthru
          _
        // Predicated region
        $region37: #{tpu_custom_call.1} parent=31 // pred_check
          %p188 = pneg %p63
        $region38: #{tpu_custom_call.1} parent=31 // pred_check_branch
          %190 = sbr.rel (%p188) target = $region40
        $region39: #{tpu_custom_call.1} parent=31 // pred_region
          %191 = dma.done [#allocation6], 128
        $region40: #{tpu_custom_call.1} parent=31 // pred_fallthru
          _
        // Predicated region
        $region41: #{tpu_custom_call.1} parent=31 // pred_check
          %p192 = pneg %p84
        $region42: #{tpu_custom_call.1} parent=31 // pred_check_branch
          %194 = sbr.rel (%p192) target = $region44
        $region43: #{tpu_custom_call.1} parent=31 // pred_region
          %195 = dma.done [#allocation6], 512
        $region44: #{tpu_custom_call.1} parent=31 // pred_fallthru
          _
        %s196 = sand.u32 %s29, 1
        %s197 = scalar_lea.sflag [#allocation3], %s196
        %s198 = sand.u32 %s29, 1
        %s199 = smul.addr %s198, 8
        %s200 = scalar_lea.vmem [#allocation2], %s199
        %p201 = pneg %p42
        %p202 = pneg %p39
        %p203 = pneg %p63
        %p204 = pneg %p60
        %p205 = pneg %p84
        %p206 = pneg %p81
        %p207 = pneg %p110
        %p208 = pneg %p107
        %s209 = sand.u32 %s97, 1
        %s210 = scalar_lea.sflag [#allocation4], %s209
        %s211 = sand.u32 %s97, 1
        %s212 = smul.addr %s211, 8
        %s213 = scalar_lea.vmem [#allocation8], %s212
        %s214 = smul.u32 2, %s21
        %s215 = smul.u32 2, %s21
        %v216 = vld [vmem:[%s183] sm:$0xff]
        %v217 = vld [vmem:[#allocation5] sm:$0xff]
        %v218 = vld [vmem:[#allocation7] sm:$0xff]
        %v219 = vld [vmem:[#allocation7 + $0x8] sm:$0xff]
        %v221 = vcombine.high %v216, %v216
        %vm223 = vcmask 1043456
        %v224 = vsel %vm223, %v216, 0.0
        %v225 = vrot.slane %v224, 4
        %v226 = vadd.f32 %v224, %v225
        %v227 = vrot.slane %v226, 2
        %v228 = vadd.f32 %v226, %v227
        %v229 = vrot.slane %v228, 1
        %v230 = vadd.f32 %v228, %v229
        %v231 = vsel %vm223, %v221, 0.0
        %v232 = vrot.slane %v231, 4
        %v233 = vadd.f32 %v231, %v232
        %v234 = vrot.slane %v233, 2
        %v235 = vadd.f32 %v233, %v234
        %v236 = vrot.slane %v235, 1
        %v237 = vadd.f32 %v235, %v236
        %v238 = vrcp.pop 4.0
        %v239 = vmul.f32 %v230, %v238
        %v240 = vmul.f32 %v237, %v238
        %v243 = vcombine.low %v239, %v240
        %v245 = vsub.f32 %v216, %v243
        %v246 = vmul.f32 %v245, %v245
        %v248 = vcombine.high %v246, %v246
        %v250 = vsel %vm223, %v246, 0.0
        %v251 = vrot.slane %v250, 4
        %v252 = vadd.f32 %v250, %v251
        %v253 = vrot.slane %v252, 2
        %v254 = vadd.f32 %v252, %v253
        %v255 = vrot.slane %v254, 1
        %v256 = vadd.f32 %v254, %v255
        %v257 = vsel %vm223, %v248, 0.0
        %v258 = vrot.slane %v257, 4
        %v259 = vadd.f32 %v257, %v258
        %v260 = vrot.slane %v259, 2
        %v261 = vadd.f32 %v259, %v260
        %v262 = vrot.slane %v261, 1
        %v263 = vadd.f32 %v261, %v262
        %v264 = vmul.f32 %v256, %v238
        %v265 = vmul.f32 %v263, %v238
        %v266 = vadd.f32 %v264, 1e-06
        %v267 = vadd.f32 %v265, 1e-06
        %v268 = vrsqrt.pop %v266
        %v269 = vrsqrt.pop %v267
        %v272 = vcombine.low %v268, %v269
        %v274 = vmul.f32 %v245, %v272
        %276 = vset.pattern.permute.xlu0 0
        %277 = vperm.xlu0 %276, %v217
        %v278 = vpop.permute.xlu0 %277
        %v280 = vunpack.c.l.s4 839922192
        %v281 = vunpack.c.0.s8 %v280
        %v282 = vlaneseq
        %v283 = vshrl.u32 %v282, 7
        %v284 = vsub.s32 %v281, %v283
        %v285 = vrot.slane %v278, %v284
        %v287 = vmul.f32 %v274, %v285
        %288 = vset.pattern.permute.xlu0 1
        %289 = vperm.xlu0 %288, %v217
        %v290 = vpop.permute.xlu0 %289
        %v292 = vunpack.c.l.s4 839922192
        %v293 = vunpack.c.0.s8 %v292
        %v294 = vlaneseq
        %v295 = vshrl.u32 %v294, 7
        %v296 = vsub.s32 %v293, %v295
        %v297 = vrot.slane %v290, %v296
        %v299 = vadd.f32 %v287, %v297
        %300 = vset.pattern.permute.xlu0 30
        %301 = vperm.xlu0 %300, %v217
        %v302 = vpop.permute.xlu0 %301
        %v305 = vlaneseq
        %v306 = vshrl.u32 %v305, 7
        %v307 = vsub.s32 0, %v306
        %v308 = vrot.slane %v299, %v307
        %v309 = vlaneseq
        %v310 = vshrl.u32 %v309, 7
        %v311 = vsub.s32 4, %v310
        %v312 = vrot.slane %v299, %v311
        %v315 = vlaneseq
        %v316 = vshrl.u32 %v315, 7
        %v317 = vsub.s32 0, %v316
        %v318 = vrot.slane %v308, %v317
        %v319 = vlaneseq
        %v320 = vshrl.u32 %v319, 7
        %v321 = vsub.s32 0, %v320
        %v322 = vrot.slane %v312, %v321
        %v323 = vmul.f32 %v302, %v318
        %v324 = vmul.f32 %v302, %v322
        %325 = vset.pattern.permute.xlu0 31
        %326 = vperm.xlu0 %325, %v217
        %v327 = vpop.permute.xlu0 %326
        %v329 = vlaneseq
        %v330 = vshrl.u32 %v329, 7
        %v331 = vsub.s32 1, %v330
        %v332 = vrot.slane %v299, %v331
        %v333 = vlaneseq
        %v334 = vshrl.u32 %v333, 7
        %v335 = vsub.s32 5, %v334
        %v336 = vrot.slane %v299, %v335
        %v339 = vlaneseq
        %v340 = vshrl.u32 %v339, 7
        %v341 = vsub.s32 1, %v340
        %v342 = vrot.slane %v332, %v341
        %v343 = vlaneseq
        %v344 = vshrl.u32 %v343, 7
        %v345 = vsub.s32 1, %v344
        %v346 = vrot.slane %v336, %v345
        %v347 = vmul.f32 %v327, %v342
        %v348 = vmul.f32 %v327, %v346
        %v349 = vadd.f32 %v323, %v347
        %v350 = vadd.f32 %v324, %v348
        %351 = vset.pattern.permute.xlu0 32
        %352 = vperm.xlu0 %351, %v217
        %v353 = vpop.permute.xlu0 %352
        %v355 = vlaneseq
        %v356 = vshrl.u32 %v355, 7
        %v357 = vsub.s32 2, %v356
        %v358 = vrot.slane %v299, %v357
        %v359 = vlaneseq
        %v360 = vshrl.u32 %v359, 7
        %v361 = vsub.s32 6, %v360
        %v362 = vrot.slane %v299, %v361
        %v365 = vlaneseq
        %v366 = vshrl.u32 %v365, 7
        %v367 = vsub.s32 2, %v366
        %v368 = vrot.slane %v358, %v367
        %v369 = vlaneseq
        %v370 = vshrl.u32 %v369, 7
        %v371 = vsub.s32 2, %v370
        %v372 = vrot.slane %v362, %v371
        %v373 = vmul.f32 %v353, %v368
        %v374 = vmul.f32 %v353, %v372
        %v375 = vadd.f32 %v349, %v373
        %v376 = vadd.f32 %v350, %v374
        %377 = vset.pattern.permute.xlu0 33
        %378 = vperm.xlu0 %377, %v217
        %v379 = vpop.permute.xlu0 %378
        %v381 = vlaneseq
        %v382 = vshrl.u32 %v381, 7
        %v383 = vsub.s32 3, %v382
        %v384 = vrot.slane %v299, %v383
        %v385 = vlaneseq
        %v386 = vshrl.u32 %v385, 7
        %v387 = vsub.s32 7, %v386
        %v388 = vrot.slane %v299, %v387
        %v391 = vlaneseq
        %v392 = vshrl.u32 %v391, 7
        %v393 = vsub.s32 3, %v392
        %v394 = vrot.slane %v384, %v393
        %v395 = vlaneseq
        %v396 = vshrl.u32 %v395, 7
        %v397 = vsub.s32 3, %v396
        %v398 = vrot.slane %v388, %v397
        %v399 = vmul.f32 %v379, %v394
        %v400 = vmul.f32 %v379, %v398
        %v401 = vadd.f32 %v375, %v399
        %v402 = vadd.f32 %v376, %v400
        %403 = vset.pattern.permute.xlu0 10
        %404 = vperm.xlu0 %403, %v217
        %v405 = vpop.permute.xlu0 %404
        %v407 = vadd.f32 %v401, %v405
        %v408 = vadd.f32 %v402, %v405
        %409 = vrot.lane.b32.xlu0 %v407, 17
        %v410 = vpop.permute.xlu0 %409
        %411 = vrot.lane.b32.xlu0 %v408, 17
        %v412 = vpop.permute.xlu0 %411
        %v413 = vlaneseq
        %v414 = vand.u32 %v413, 127
        %vm415 = vcmp.lt.s32.totalorder %v414, 17
        %v416 = vsel %vm415, %v410, %v412
        %v417 = vsel %vm415, %v412, %v410
        %v418 = vlaneseq
        %v419 = vshrl.u32 %v418, 7
        %v420 = vsub.s32 4, %v419
        %v421 = vrot.slane %v218, %v420
        %v422 = vlaneseq
        %v423 = vshrl.u32 %v422, 7
        %v424 = vsub.s32 4, %v423
        %v425 = vrot.slane %v219, %v424
        %v426 = vmul.f32 %v417, %v421
        %v427 = vmul.f32 %v416, %v425
        %428 = vrot.lane.b32.xlu0 %v407, 16
        %v429 = vpop.permute.xlu0 %428
        %430 = vrot.lane.b32.xlu0 %v408, 16
        %v431 = vpop.permute.xlu0 %430
        %vm432 = vcmp.lt.s32.totalorder %v414, 16
        %v433 = vsel %vm432, %v429, %v431
        %v434 = vsel %vm432, %v431, %v429
        %v435 = vlaneseq
        %v436 = vshrl.u32 %v435, 7
        %v437 = vsub.s32 2, %v436
        %v438 = vrot.slane %v218, %v437
        %v439 = vlaneseq
        %v440 = vshrl.u32 %v439, 7
        %v441 = vsub.s32 2, %v440
        %v442 = vrot.slane %v219, %v441
        %v443 = vmul.f32 %v434, %v438
        %v444 = vmul.f32 %v433, %v442
        %445 = vrot.lane.b32.xlu0 %v407, 15
        %v446 = vpop.permute.xlu0 %445
        %447 = vrot.lane.b32.xlu0 %v408, 15
        %v448 = vpop.permute.xlu0 %447
        %vm449 = vcmp.lt.s32.totalorder %v414, 15
        %v450 = vsel %vm449, %v446, %v448
        %v451 = vsel %vm449, %v448, %v446
        %v452 = vlaneseq
        %v453 = vshrl.u32 %v452, 7
        %v454 = vsub.s32 5, %v453
        %v455 = vrot.slane %v218, %v454
        %v456 = vlaneseq
        %v457 = vshrl.u32 %v456, 7
        %v458 = vsub.s32 5, %v457
        %v459 = vrot.slane %v219, %v458
        %v460 = vmul.f32 %v451, %v455
        %v461 = vmul.f32 %v450, %v459
        %462 = vrot.lane.b32.xlu0 %v407, 1
        %v463 = vpop.permute.xlu0 %462
        %464 = vrot.lane.b32.xlu0 %v408, 1
        %v465 = vpop.permute.xlu0 %464
        %vm466 = vcmp.lt.s32.totalorder %v414, 1
        %v467 = vsel %vm466, %v463, %v465
        %v468 = vsel %vm466, %v465, %v463
        %v469 = vlaneseq
        %v470 = vshrl.u32 %v469, 7
        %v471 = vsub.s32 0, %v470
        %v472 = vrot.slane %v218, %v471
        %v473 = vlaneseq
        %v474 = vshrl.u32 %v473, 7
        %v475 = vsub.s32 0, %v474
        %v476 = vrot.slane %v219, %v475
        %v477 = vmul.f32 %v468, %v472
        %v478 = vmul.f32 %v467, %v476
        %479 = vrot.lane.b32.xlu0 %v407, 127
        %v480 = vpop.permute.xlu0 %479
        %481 = vrot.lane.b32.xlu0 %v408, 127
        %v482 = vpop.permute.xlu0 %481
        %vm483 = vcmp.lt.s32.totalorder %v414, 127
        %v484 = vsel %vm483, %v480, %v482
        %v485 = vsel %vm483, %v482, %v480
        %v486 = vlaneseq
        %v487 = vshrl.u32 %v486, 7
        %v488 = vsub.s32 1, %v487
        %v489 = vrot.slane %v218, %v488
        %v490 = vlaneseq
        %v491 = vshrl.u32 %v490, 7
        %v492 = vsub.s32 1, %v491
        %v493 = vrot.slane %v219, %v492
        %v494 = vmul.f32 %v484, %v489
        %v495 = vmul.f32 %v485, %v493
        %496 = vrot.lane.b32.xlu0 %v407, 113
        %v497 = vpop.permute.xlu0 %496
        %498 = vrot.lane.b32.xlu0 %v408, 113
        %v499 = vpop.permute.xlu0 %498
        %vm500 = vcmp.lt.s32.totalorder %v414, 113
        %v501 = vsel %vm500, %v497, %v499
        %v502 = vsel %vm500, %v499, %v497
        %v503 = vlaneseq
        %v504 = vshrl.u32 %v503, 7
        %v505 = vsub.s32 6, %v504
        %v506 = vrot.slane %v218, %v505
        %v507 = vlaneseq
        %v508 = vshrl.u32 %v507, 7
        %v509 = vsub.s32 6, %v508
        %v510 = vrot.slane %v219, %v509
        %v511 = vmul.f32 %v501, %v506
        %v512 = vmul.f32 %v502, %v510
        %513 = vrot.lane.b32.xlu0 %v407, 112
        %v514 = vpop.permute.xlu0 %513
        %515 = vrot.lane.b32.xlu0 %v408, 112
        %v516 = vpop.permute.xlu0 %515
        %vm517 = vcmp.lt.s32.totalorder %v414, 112
        %v518 = vsel %vm517, %v514, %v516
        %v519 = vsel %vm517, %v516, %v514
        %v520 = vlaneseq
        %v521 = vshrl.u32 %v520, 7
        %v522 = vsub.s32 3, %v521
        %v523 = vrot.slane %v218, %v522
        %v524 = vlaneseq
        %v525 = vshrl.u32 %v524, 7
        %v526 = vsub.s32 3, %v525
        %v527 = vrot.slane %v219, %v526
        %v528 = vmul.f32 %v518, %v523
        %v529 = vmul.f32 %v519, %v527
        %530 = vrot.lane.b32.xlu0 %v407, 111
        %v531 = vpop.permute.xlu0 %530
        %532 = vrot.lane.b32.xlu0 %v408, 111
        %v533 = vpop.permute.xlu0 %532
        %vm534 = vcmp.lt.s32.totalorder %v414, 111
        %v535 = vsel %vm534, %v531, %v533
        %v536 = vsel %vm534, %v533, %v531
        %v537 = vlaneseq
        %v538 = vshrl.u32 %v537, 7
        %v539 = vsub.s32 7, %v538
        %v540 = vrot.slane %v218, %v539
        %v541 = vlaneseq
        %v542 = vshrl.u32 %v541, 7
        %v543 = vsub.s32 7, %v542
        %v544 = vrot.slane %v219, %v543
        %v545 = vmul.f32 %v535, %v540
        %v546 = vmul.f32 %v536, %v544
        %547 = vset.pattern.permute.xlu0 15
        %548 = vperm.xlu0 %547, %v217
        %v549 = vpop.permute.xlu0 %548
        %v551 = vmul.f32 %v549, %v477
        %v552 = vmul.f32 %v549, %v478
        %553 = vset.pattern.permute.xlu0 16
        %554 = vperm.xlu0 %553, %v217
        %v555 = vpop.permute.xlu0 %554
        %v557 = vmul.f32 %v555, %v407
        %v558 = vmul.f32 %v555, %v408
        %v559 = vadd.f32 %v551, %v557
        %v560 = vadd.f32 %v552, %v558
        %561 = vset.pattern.permute.xlu0 17
        %562 = vperm.xlu0 %561, %v217
        %v563 = vpop.permute.xlu0 %562
        %v565 = vmul.f32 %v563, %v494
        %v566 = vmul.f32 %v563, %v495
        %v567 = vadd.f32 %v559, %v565
        %v568 = vadd.f32 %v560, %v566
        %569 = vset.pattern.permute.xlu0 12
        %570 = vperm.xlu0 %569, %v217
        %v571 = vpop.permute.xlu0 %570
        %v573 = vadd.f32 %v567, %v571
        %v574 = vadd.f32 %v568, %v571
        %575 = vset.pattern.permute.xlu0 18
        %576 = vperm.xlu0 %575, %v217
        %v577 = vpop.permute.xlu0 %576
        %v579 = vmul.f32 %v577, %v426
        %v580 = vmul.f32 %v577, %v427
        %581 = vset.pattern.permute.xlu0 19
        %582 = vperm.xlu0 %581, %v217
        %v583 = vpop.permute.xlu0 %582
        %v585 = vmul.f32 %v583, %v443
        %v586 = vmul.f32 %v583, %v444
        %v587 = vadd.f32 %v579, %v585
        %v588 = vadd.f32 %v580, %v586
        %589 = vset.pattern.permute.xlu0 20
        %590 = vperm.xlu0 %589, %v217
        %v591 = vpop.permute.xlu0 %590
        %v593 = vmul.f32 %v591, %v460
        %v594 = vmul.f32 %v591, %v461
        %v595 = vadd.f32 %v587, %v593
        %v596 = vadd.f32 %v588, %v594
        %597 = vset.pattern.permute.xlu0 21
        %598 = vperm.xlu0 %597, %v217
        %v599 = vpop.permute.xlu0 %598
        %v601 = vmul.f32 %v599, %v477
        %v602 = vmul.f32 %v599, %v478
        %v603 = vadd.f32 %v595, %v601
        %v604 = vadd.f32 %v596, %v602
        %605 = vset.pattern.permute.xlu0 22
        %606 = vperm.xlu0 %605, %v217
        %v607 = vpop.permute.xlu0 %606
        %v609 = vmul.f32 %v607, %v407
        %v610 = vmul.f32 %v607, %v408
        %v611 = vadd.f32 %v603, %v609
        %v612 = vadd.f32 %v604, %v610
        %613 = vset.pattern.permute.xlu0 23
        %614 = vperm.xlu0 %613, %v217
        %v615 = vpop.permute.xlu0 %614
        %v617 = vmul.f32 %v615, %v494
        %v618 = vmul.f32 %v615, %v495
        %v619 = vadd.f32 %v611, %v617
        %v620 = vadd.f32 %v612, %v618
        %621 = vset.pattern.permute.xlu0 24
        %622 = vperm.xlu0 %621, %v217
        %v623 = vpop.permute.xlu0 %622
        %v625 = vmul.f32 %v623, %v511
        %v626 = vmul.f32 %v623, %v512
        %v627 = vadd.f32 %v619, %v625
        %v628 = vadd.f32 %v620, %v626
        %629 = vset.pattern.permute.xlu0 25
        %630 = vperm.xlu0 %629, %v217
        %v631 = vpop.permute.xlu0 %630
        %v633 = vmul.f32 %v631, %v528
        %v634 = vmul.f32 %v631, %v529
        %v635 = vadd.f32 %v627, %v633
        %v636 = vadd.f32 %v628, %v634
        %637 = vset.pattern.permute.xlu0 26
        %638 = vperm.xlu0 %637, %v217
        %v639 = vpop.permute.xlu0 %638
        %v641 = vmul.f32 %v639, %v545
        %v642 = vmul.f32 %v639, %v546
        %v643 = vadd.f32 %v635, %v641
        %v644 = vadd.f32 %v636, %v642
        %645 = vset.pattern.permute.xlu0 13
        %646 = vperm.xlu0 %645, %v217
        %v647 = vpop.permute.xlu0 %646
        %v649 = vadd.f32 %v643, %v647
        %v650 = vadd.f32 %v644, %v647
        %651 = vset.pattern.permute.xlu0 27
        %652 = vperm.xlu0 %651, %v217
        %v653 = vpop.permute.xlu0 %652
        %v655 = vmul.f32 %v653, %v443
        %v656 = vmul.f32 %v653, %v444
        %657 = vset.pattern.permute.xlu0 28
        %658 = vperm.xlu0 %657, %v217
        %v659 = vpop.permute.xlu0 %658
        %v661 = vmul.f32 %v659, %v407
        %v662 = vmul.f32 %v659, %v408
        %v663 = vadd.f32 %v655, %v661
        %v664 = vadd.f32 %v656, %v662
        %665 = vset.pattern.permute.xlu0 29
        %666 = vperm.xlu0 %665, %v217
        %v667 = vpop.permute.xlu0 %666
        %v669 = vmul.f32 %v667, %v528
        %v670 = vmul.f32 %v667, %v529
        %v671 = vadd.f32 %v663, %v669
        %v672 = vadd.f32 %v664, %v670
        %673 = vset.pattern.permute.xlu0 14
        %674 = vperm.xlu0 %673, %v217
        %v675 = vpop.permute.xlu0 %674
        %v677 = vadd.f32 %v671, %v675
        %v678 = vadd.f32 %v672, %v675
        %v681 = vrot.slane %v649, 4
        %v682 = vrot.slane %v650, 4
        %v685 = vmul.f32 %v573, %v681
        %v686 = vmul.f32 %v574, %v682
        %687 = vset.pattern.permute.xlu0 38
        %688 = vperm.xlu0 %687, %v217
        %v689 = vpop.permute.xlu0 %688
        %v691 = vlaneseq
        %v692 = vshrl.u32 %v691, 7
        %v693 = vsub.s32 0, %v692
        %v694 = vrot.slane %v685, %v693
        %v695 = vlaneseq
        %v696 = vshrl.u32 %v695, 7
        %v697 = vsub.s32 0, %v696
        %v698 = vrot.slane %v686, %v697
        %v699 = vmul.f32 %v689, %v694
        %v700 = vmul.f32 %v689, %v698
        %701 = vset.pattern.permute.xlu0 39
        %702 = vperm.xlu0 %701, %v217
        %v703 = vpop.permute.xlu0 %702
        %v705 = vlaneseq
        %v706 = vshrl.u32 %v705, 7
        %v707 = vsub.s32 1, %v706
        %v708 = vrot.slane %v685, %v707
        %v709 = vlaneseq
        %v710 = vshrl.u32 %v709, 7
        %v711 = vsub.s32 1, %v710
        %v712 = vrot.slane %v686, %v711
        %v713 = vmul.f32 %v703, %v708
        %v714 = vmul.f32 %v703, %v712
        %v715 = vadd.f32 %v699, %v713
        %v716 = vadd.f32 %v700, %v714
        %717 = vset.pattern.permute.xlu0 40
        %718 = vperm.xlu0 %717, %v217
        %v719 = vpop.permute.xlu0 %718
        %v721 = vlaneseq
        %v722 = vshrl.u32 %v721, 7
        %v723 = vsub.s32 2, %v722
        %v724 = vrot.slane %v685, %v723
        %v725 = vlaneseq
        %v726 = vshrl.u32 %v725, 7
        %v727 = vsub.s32 2, %v726
        %v728 = vrot.slane %v686, %v727
        %v729 = vmul.f32 %v719, %v724
        %v730 = vmul.f32 %v719, %v728
        %v731 = vadd.f32 %v715, %v729
        %v732 = vadd.f32 %v716, %v730
        %733 = vset.pattern.permute.xlu0 41
        %734 = vperm.xlu0 %733, %v217
        %v735 = vpop.permute.xlu0 %734
        %v737 = vlaneseq
        %v738 = vshrl.u32 %v737, 7
        %v739 = vsub.s32 3, %v738
        %v740 = vrot.slane %v685, %v739
        %v741 = vlaneseq
        %v742 = vshrl.u32 %v741, 7
        %v743 = vsub.s32 3, %v742
        %v744 = vrot.slane %v686, %v743
        %v745 = vmul.f32 %v735, %v740
        %v746 = vmul.f32 %v735, %v744
        %v747 = vadd.f32 %v731, %v745
        %v748 = vadd.f32 %v732, %v746
        %v751 = vrot.slane %v677, 4
        %v752 = vrot.slane %v678, 4
        %v755 = vmul.f32 %v573, %v751
        %v756 = vmul.f32 %v574, %v752
        %757 = vset.pattern.permute.xlu0 42
        %758 = vperm.xlu0 %757, %v217
        %v759 = vpop.permute.xlu0 %758
        %v761 = vlaneseq
        %v762 = vshrl.u32 %v761, 7
        %v763 = vsub.s32 4, %v762
        %v764 = vrot.slane %v755, %v763
        %v765 = vlaneseq
        %v766 = vshrl.u32 %v765, 7
        %v767 = vsub.s32 4, %v766
        %v768 = vrot.slane %v756, %v767
        %v769 = vmul.f32 %v759, %v764
        %v770 = vmul.f32 %v759, %v768
        %771 = vset.pattern.permute.xlu0 43
        %772 = vperm.xlu0 %771, %v217
        %v773 = vpop.permute.xlu0 %772
        %v775 = vlaneseq
        %v776 = vshrl.u32 %v775, 7
        %v777 = vsub.s32 5, %v776
        %v778 = vrot.slane %v755, %v777
        %v779 = vlaneseq
        %v780 = vshrl.u32 %v779, 7
        %v781 = vsub.s32 5, %v780
        %v782 = vrot.slane %v756, %v781
        %v783 = vmul.f32 %v773, %v778
        %v784 = vmul.f32 %v773, %v782
        %v785 = vadd.f32 %v769, %v783
        %v786 = vadd.f32 %v770, %v784
        %787 = vset.pattern.permute.xlu0 44
        %788 = vperm.xlu0 %787, %v217
        %v789 = vpop.permute.xlu0 %788
        %v791 = vlaneseq
        %v792 = vshrl.u32 %v791, 7
        %v793 = vsub.s32 6, %v792
        %v794 = vrot.slane %v755, %v793
        %v795 = vlaneseq
        %v796 = vshrl.u32 %v795, 7
        %v797 = vsub.s32 6, %v796
        %v798 = vrot.slane %v756, %v797
        %v799 = vmul.f32 %v789, %v794
        %v800 = vmul.f32 %v789, %v798
        %v801 = vadd.f32 %v785, %v799
        %v802 = vadd.f32 %v786, %v800
        %803 = vset.pattern.permute.xlu0 45
        %804 = vperm.xlu0 %803, %v217
        %v805 = vpop.permute.xlu0 %804
        %v807 = vlaneseq
        %v808 = vshrl.u32 %v807, 7
        %v809 = vsub.s32 7, %v808
        %v810 = vrot.slane %v755, %v809
        %v811 = vlaneseq
        %v812 = vshrl.u32 %v811, 7
        %v813 = vsub.s32 7, %v812
        %v814 = vrot.slane %v756, %v813
        %v815 = vmul.f32 %v805, %v810
        %v816 = vmul.f32 %v805, %v814
        %v817 = vadd.f32 %v801, %v815
        %v818 = vadd.f32 %v802, %v816
        %v819 = vadd.f32 %v747, %v817
        %v820 = vadd.f32 %v748, %v818
        %v821 = vmul.f32 %v649, %v751
        %v822 = vmul.f32 %v650, %v752
        %823 = vset.pattern.permute.xlu0 46
        %824 = vperm.xlu0 %823, %v217
        %v825 = vpop.permute.xlu0 %824
        %v827 = vlaneseq
        %v828 = vshrl.u32 %v827, 7
        %v829 = vsub.s32 0, %v828
        %v830 = vrot.slane %v821, %v829
        %v831 = vlaneseq
        %v832 = vshrl.u32 %v831, 7
        %v833 = vsub.s32 0, %v832
        %v834 = vrot.slane %v822, %v833
        %v835 = vmul.f32 %v825, %v830
        %v836 = vmul.f32 %v825, %v834
        %837 = vset.pattern.permute.xlu0 47
        %838 = vperm.xlu0 %837, %v217
        %v839 = vpop.permute.xlu0 %838
        %v841 = vlaneseq
        %v842 = vshrl.u32 %v841, 7
        %v843 = vsub.s32 1, %v842
        %v844 = vrot.slane %v821, %v843
        %v845 = vlaneseq
        %v846 = vshrl.u32 %v845, 7
        %v847 = vsub.s32 1, %v846
        %v848 = vrot.slane %v822, %v847
        %v849 = vmul.f32 %v839, %v844
        %v850 = vmul.f32 %v839, %v848
        %v851 = vadd.f32 %v835, %v849
        %v852 = vadd.f32 %v836, %v850
        %853 = vset.pattern.permute.xlu0 48
        %854 = vperm.xlu0 %853, %v217
        %v855 = vpop.permute.xlu0 %854
        %v857 = vlaneseq
        %v858 = vshrl.u32 %v857, 7
        %v859 = vsub.s32 2, %v858
        %v860 = vrot.slane %v821, %v859
        %v861 = vlaneseq
        %v862 = vshrl.u32 %v861, 7
        %v863 = vsub.s32 2, %v862
        %v864 = vrot.slane %v822, %v863
        %v865 = vmul.f32 %v855, %v860
        %v866 = vmul.f32 %v855, %v864
        %v867 = vadd.f32 %v851, %v865
        %v868 = vadd.f32 %v852, %v866
        %869 = vset.pattern.permute.xlu0 49
        %870 = vperm.xlu0 %869, %v217
        %v871 = vpop.permute.xlu0 %870
        %v873 = vlaneseq
        %v874 = vshrl.u32 %v873, 7
        %v875 = vsub.s32 3, %v874
        %v876 = vrot.slane %v821, %v875
        %v877 = vlaneseq
        %v878 = vshrl.u32 %v877, 7
        %v879 = vsub.s32 3, %v878
        %v880 = vrot.slane %v822, %v879
        %v881 = vmul.f32 %v871, %v876
        %v882 = vmul.f32 %v871, %v880
        %v883 = vadd.f32 %v867, %v881
        %v884 = vadd.f32 %v868, %v882
        %v885 = vadd.f32 %v819, %v883
        %v886 = vadd.f32 %v820, %v884
        %887 = vset.pattern.permute.xlu0 4
        %888 = vperm.xlu0 %887, %v217
        %v889 = vpop.permute.xlu0 %888
        %v891 = vadd.f32 %v885, %v889
        %v892 = vadd.f32 %v886, %v889
        %v893 = vsel %vm223, %v891, 0.0
        %v894 = vsel %vm223, %v892, 0.0
        %v895 = vadd.f32 %v893, %v894
        %896 = vadd.xlane.f32.xlu0 %v895
        %v897 = vpop.xlane.xlu0 %896
        %v898 = vrcp.pop 256.0
        %v899 = vmul.f32 %v897, %v898
        %v900 = vlaneseq
        %v901 = vshrl.u32 %v900, 7
        %v902 = vsub.s32 0, %v901
        %v903 = vrot.slane %v899, %v902
        %v904 = vmul.f32 %v217, %v903
        %v905 = vlaneseq
        %v906 = vshrl.u32 %v905, 7
        %v907 = vsub.s32 1, %v906
        %v908 = vrot.slane %v899, %v907
        %v909 = vmul.f32 %v217, %v908
        %911 = vrot.lane.b32.xlu0 %v909, 127
        %v912 = vpop.permute.xlu0 %911
        %v914 = vadd.f32 %v904, %v912
        %v915 = vlaneseq
        %v916 = vshrl.u32 %v915, 7
        %v917 = vsub.s32 2, %v916
        %v918 = vrot.slane %v899, %v917
        %v919 = vmul.f32 %v217, %v918
        %921 = vrot.lane.b32.xlu0 %v919, 126
        %v922 = vpop.permute.xlu0 %921
        %v924 = vadd.f32 %v914, %v922
        %v925 = vlaneseq
        %v926 = vshrl.u32 %v925, 7
        %v927 = vsub.s32 3, %v926
        %v928 = vrot.slane %v899, %v927
        %v929 = vmul.f32 %v217, %v928
        %931 = vrot.lane.b32.xlu0 %v929, 125
        %v932 = vpop.permute.xlu0 %931
        %v934 = vadd.f32 %v924, %v932
        %935 = vrot.lane.b32.xlu0 %v217, 45
        %v936 = vpop.permute.xlu0 %935
        %v938 = vadd.f32 %v934, %v936
        %940 = vset.pattern.permute.xlu0 50
        %941 = vperm.xlu0 %940, %v938
        %v942 = vpop.permute.xlu0 %941
        %v944 = vmul.f32 %v891, %v942
        %v945 = vmul.f32 %v892, %v942
        %946 = vset.pattern.permute.xlu0 54
        %947 = vperm.xlu0 %946, %v217
        %v948 = vpop.permute.xlu0 %947
        %v950 = vlaneseq
        %v951 = vshrl.u32 %v950, 7
        %v952 = vsub.s32 0, %v951
        %v953 = vrot.slane %v944, %v952
        %v954 = vlaneseq
        %v955 = vshrl.u32 %v954, 7
        %v956 = vsub.s32 0, %v955
        %v957 = vrot.slane %v945, %v956
        %v958 = vmul.f32 %v948, %v953
        %v959 = vmul.f32 %v948, %v957
        %960 = vset.pattern.permute.xlu0 55
        %961 = vperm.xlu0 %960, %v217
        %v962 = vpop.permute.xlu0 %961
        %v964 = vlaneseq
        %v965 = vshrl.u32 %v964, 7
        %v966 = vsub.s32 1, %v965
        %v967 = vrot.slane %v944, %v966
        %v968 = vlaneseq
        %v969 = vshrl.u32 %v968, 7
        %v970 = vsub.s32 1, %v969
        %v971 = vrot.slane %v945, %v970
        %v972 = vmul.f32 %v962, %v967
        %v973 = vmul.f32 %v962, %v971
        %v974 = vadd.f32 %v958, %v972
        %v975 = vadd.f32 %v959, %v973
        %976 = vset.pattern.permute.xlu0 56
        %977 = vperm.xlu0 %976, %v217
        %v978 = vpop.permute.xlu0 %977
        %v980 = vlaneseq
        %v981 = vshrl.u32 %v980, 7
        %v982 = vsub.s32 2, %v981
        %v983 = vrot.slane %v944, %v982
        %v984 = vlaneseq
        %v985 = vshrl.u32 %v984, 7
        %v986 = vsub.s32 2, %v985
        %v987 = vrot.slane %v945, %v986
        %v988 = vmul.f32 %v978, %v983
        %v989 = vmul.f32 %v978, %v987
        %v990 = vadd.f32 %v974, %v988
        %v991 = vadd.f32 %v975, %v989
        %992 = vset.pattern.permute.xlu0 57
        %993 = vperm.xlu0 %992, %v217
        %v994 = vpop.permute.xlu0 %993
        %v996 = vlaneseq
        %v997 = vshrl.u32 %v996, 7
        %v998 = vsub.s32 3, %v997
        %v999 = vrot.slane %v944, %v998
        %v1000 = vlaneseq
        %v1001 = vshrl.u32 %v1000, 7
        %v1002 = vsub.s32 3, %v1001
        %v1003 = vrot.slane %v945, %v1002
        %v1004 = vmul.f32 %v994, %v999
        %v1005 = vmul.f32 %v994, %v1003
        %v1006 = vadd.f32 %v990, %v1004
        %v1007 = vadd.f32 %v991, %v1005
        %1008 = vset.pattern.permute.xlu0 6
        %1009 = vperm.xlu0 %1008, %v217
        %v1010 = vpop.permute.xlu0 %1009
        %v1012 = vadd.f32 %v1006, %v1010
        %v1013 = vadd.f32 %v1007, %v1010
        %1014 = vset.pattern.permute.xlu0 8
        %1015 = vperm.xlu0 %1014, %v217
        %v1016 = vpop.permute.xlu0 %1015
        %v1018 = vmul.f32 %v1012, %v1016
        %v1019 = vmul.f32 %v1013, %v1016
        %v1022 = vcombine.low %v1018, %v1019
        %v1024 = vadd.f32 %v216, %v1022
        %v1026 = vcombine.high %v1024, %v1024
        %v1028 = vsel %vm223, %v1024, 0.0
        %v1029 = vrot.slane %v1028, 4
        %v1030 = vadd.f32 %v1028, %v1029
        %v1031 = vrot.slane %v1030, 2
        %v1032 = vadd.f32 %v1030, %v1031
        %v1033 = vrot.slane %v1032, 1
        %v1034 = vadd.f32 %v1032, %v1033
        %v1035 = vsel %vm223, %v1026, 0.0
        %v1036 = vrot.slane %v1035, 4
        %v1037 = vadd.f32 %v1035, %v1036
        %v1038 = vrot.slane %v1037, 2
        %v1039 = vadd.f32 %v1037, %v1038
        %v1040 = vrot.slane %v1039, 1
        %v1041 = vadd.f32 %v1039, %v1040
        %v1042 = vmul.f32 %v1034, %v238
        %v1043 = vmul.f32 %v1041, %v238
        %v1046 = vcombine.low %v1042, %v1043
        %v1048 = vsub.f32 %v1024, %v1046
        %v1049 = vmul.f32 %v1048, %v1048
        %v1051 = vcombine.high %v1049, %v1049
        %v1053 = vsel %vm223, %v1049, 0.0
        %v1054 = vrot.slane %v1053, 4
        %v1055 = vadd.f32 %v1053, %v1054
        %v1056 = vrot.slane %v1055, 2
        %v1057 = vadd.f32 %v1055, %v1056
        %v1058 = vrot.slane %v1057, 1
        %v1059 = vadd.f32 %v1057, %v1058
        %v1060 = vsel %vm223, %v1051, 0.0
        %v1061 = vrot.slane %v1060, 4
        %v1062 = vadd.f32 %v1060, %v1061
        %v1063 = vrot.slane %v1062, 2
        %v1064 = vadd.f32 %v1062, %v1063
        %v1065 = vrot.slane %v1064, 1
        %v1066 = vadd.f32 %v1064, %v1065
        %v1067 = vmul.f32 %v1059, %v238
        %v1068 = vmul.f32 %v1066, %v238
        %v1069 = vadd.f32 %v1067, 1e-06
        %v1070 = vadd.f32 %v1068, 1e-06
        %v1071 = vrsqrt.pop %v1069
        %v1072 = vrsqrt.pop %v1070
        %v1075 = vcombine.low %v1071, %v1072
        %v1077 = vmul.f32 %v1048, %v1075
        %1078 = vset.pattern.permute.xlu0 2
        %1079 = vperm.xlu0 %1078, %v217
        %v1080 = vpop.permute.xlu0 %1079
        %v1082 = vunpack.c.l.s4 839922192
        %v1083 = vunpack.c.0.s8 %v1082
        %v1084 = vlaneseq
        %v1085 = vshrl.u32 %v1084, 7
        %v1086 = vsub.s32 %v1083, %v1085
        %v1087 = vrot.slane %v1080, %v1086
        %v1089 = vmul.f32 %v1077, %v1087
        %1090 = vset.pattern.permute.xlu0 3
        %1091 = vperm.xlu0 %1090, %v217
        %v1092 = vpop.permute.xlu0 %1091
        %v1094 = vunpack.c.l.s4 839922192
        %v1095 = vunpack.c.0.s8 %v1094
        %v1096 = vlaneseq
        %v1097 = vshrl.u32 %v1096, 7
        %v1098 = vsub.s32 %v1095, %v1097
        %v1099 = vrot.slane %v1092, %v1098
        %v1101 = vadd.f32 %v1089, %v1099
        %1102 = vset.pattern.permute.xlu0 34
        %1103 = vperm.xlu0 %1102, %v217
        %v1104 = vpop.permute.xlu0 %1103
        %v1107 = vlaneseq
        %v1108 = vshrl.u32 %v1107, 7
        %v1109 = vsub.s32 0, %v1108
        %v1110 = vrot.slane %v1101, %v1109
        %v1111 = vlaneseq
        %v1112 = vshrl.u32 %v1111, 7
        %v1113 = vsub.s32 4, %v1112
        %v1114 = vrot.slane %v1101, %v1113
        %v1117 = vlaneseq
        %v1118 = vshrl.u32 %v1117, 7
        %v1119 = vsub.s32 0, %v1118
        %v1120 = vrot.slane %v1110, %v1119
        %v1121 = vlaneseq
        %v1122 = vshrl.u32 %v1121, 7
        %v1123 = vsub.s32 0, %v1122
        %v1124 = vrot.slane %v1114, %v1123
        %v1125 = vmul.f32 %v1104, %v1120
        %v1126 = vmul.f32 %v1104, %v1124
        %1127 = vset.pattern.permute.xlu0 35
        %1128 = vperm.xlu0 %1127, %v217
        %v1129 = vpop.permute.xlu0 %1128
        %v1131 = vlaneseq
        %v1132 = vshrl.u32 %v1131, 7
        %v1133 = vsub.s32 1, %v1132
        %v1134 = vrot.slane %v1101, %v1133
        %v1135 = vlaneseq
        %v1136 = vshrl.u32 %v1135, 7
        %v1137 = vsub.s32 5, %v1136
        %v1138 = vrot.slane %v1101, %v1137
        %v1141 = vlaneseq
        %v1142 = vshrl.u32 %v1141, 7
        %v1143 = vsub.s32 1, %v1142
        %v1144 = vrot.slane %v1134, %v1143
        %v1145 = vlaneseq
        %v1146 = vshrl.u32 %v1145, 7
        %v1147 = vsub.s32 1, %v1146
        %v1148 = vrot.slane %v1138, %v1147
        %v1149 = vmul.f32 %v1129, %v1144
        %v1150 = vmul.f32 %v1129, %v1148
        %v1151 = vadd.f32 %v1125, %v1149
        %v1152 = vadd.f32 %v1126, %v1150
        %1153 = vset.pattern.permute.xlu0 36
        %1154 = vperm.xlu0 %1153, %v217
        %v1155 = vpop.permute.xlu0 %1154
        %v1157 = vlaneseq
        %v1158 = vshrl.u32 %v1157, 7
        %v1159 = vsub.s32 2, %v1158
        %v1160 = vrot.slane %v1101, %v1159
        %v1161 = vlaneseq
        %v1162 = vshrl.u32 %v1161, 7
        %v1163 = vsub.s32 6, %v1162
        %v1164 = vrot.slane %v1101, %v1163
        %v1167 = vlaneseq
        %v1168 = vshrl.u32 %v1167, 7
        %v1169 = vsub.s32 2, %v1168
        %v1170 = vrot.slane %v1160, %v1169
        %v1171 = vlaneseq
        %v1172 = vshrl.u32 %v1171, 7
        %v1173 = vsub.s32 2, %v1172
        %v1174 = vrot.slane %v1164, %v1173
        %v1175 = vmul.f32 %v1155, %v1170
        %v1176 = vmul.f32 %v1155, %v1174
        %v1177 = vadd.f32 %v1151, %v1175
        %v1178 = vadd.f32 %v1152, %v1176
        %1179 = vset.pattern.permute.xlu0 37
        %1180 = vperm.xlu0 %1179, %v217
        %v1181 = vpop.permute.xlu0 %1180
        %v1183 = vlaneseq
        %v1184 = vshrl.u32 %v1183, 7
        %v1185 = vsub.s32 3, %v1184
        %v1186 = vrot.slane %v1101, %v1185
        %v1187 = vlaneseq
        %v1188 = vshrl.u32 %v1187, 7
        %v1189 = vsub.s32 7, %v1188
        %v1190 = vrot.slane %v1101, %v1189
        %v1193 = vlaneseq
        %v1194 = vshrl.u32 %v1193, 7
        %v1195 = vsub.s32 3, %v1194
        %v1196 = vrot.slane %v1186, %v1195
        %v1197 = vlaneseq
        %v1198 = vshrl.u32 %v1197, 7
        %v1199 = vsub.s32 3, %v1198
        %v1200 = vrot.slane %v1190, %v1199
        %v1201 = vmul.f32 %v1181, %v1196
        %v1202 = vmul.f32 %v1181, %v1200
        %v1203 = vadd.f32 %v1177, %v1201
        %v1204 = vadd.f32 %v1178, %v1202
        %1205 = vset.pattern.permute.xlu0 11
        %1206 = vperm.xlu0 %1205, %v217
        %v1207 = vpop.permute.xlu0 %1206
        %v1209 = vadd.f32 %v1203, %v1207
        %v1210 = vadd.f32 %v1204, %v1207
        %v1213 = vrot.slane %v1209, 4
        %v1214 = vrot.slane %v1210, 4
        %v1217 = vmul.f32 %v1209, %v1213
        %v1218 = vmul.f32 %v1210, %v1214
        %1219 = vset.pattern.permute.xlu0 58
        %1220 = vperm.xlu0 %1219, %v217
        %v1221 = vpop.permute.xlu0 %1220
        %v1223 = vlaneseq
        %v1224 = vshrl.u32 %v1223, 7
        %v1225 = vsub.s32 0, %v1224
        %v1226 = vrot.slane %v1217, %v1225
        %v1227 = vlaneseq
        %v1228 = vshrl.u32 %v1227, 7
        %v1229 = vsub.s32 0, %v1228
        %v1230 = vrot.slane %v1218, %v1229
        %v1231 = vmul.f32 %v1221, %v1226
        %v1232 = vmul.f32 %v1221, %v1230
        %1233 = vset.pattern.permute.xlu0 59
        %1234 = vperm.xlu0 %1233, %v217
        %v1235 = vpop.permute.xlu0 %1234
        %v1237 = vlaneseq
        %v1238 = vshrl.u32 %v1237, 7
        %v1239 = vsub.s32 1, %v1238
        %v1240 = vrot.slane %v1217, %v1239
        %v1241 = vlaneseq
        %v1242 = vshrl.u32 %v1241, 7
        %v1243 = vsub.s32 1, %v1242
        %v1244 = vrot.slane %v1218, %v1243
        %v1245 = vmul.f32 %v1235, %v1240
        %v1246 = vmul.f32 %v1235, %v1244
        %v1247 = vadd.f32 %v1231, %v1245
        %v1248 = vadd.f32 %v1232, %v1246
        %1249 = vset.pattern.permute.xlu0 60
        %1250 = vperm.xlu0 %1249, %v217
        %v1251 = vpop.permute.xlu0 %1250
        %v1253 = vlaneseq
        %v1254 = vshrl.u32 %v1253, 7
        %v1255 = vsub.s32 2, %v1254
        %v1256 = vrot.slane %v1217, %v1255
        %v1257 = vlaneseq
        %v1258 = vshrl.u32 %v1257, 7
        %v1259 = vsub.s32 2, %v1258
        %v1260 = vrot.slane %v1218, %v1259
        %v1261 = vmul.f32 %v1251, %v1256
        %v1262 = vmul.f32 %v1251, %v1260
        %v1263 = vadd.f32 %v1247, %v1261
        %v1264 = vadd.f32 %v1248, %v1262
        %1265 = vset.pattern.permute.xlu0 61
        %1266 = vperm.xlu0 %1265, %v217
        %v1267 = vpop.permute.xlu0 %1266
        %v1269 = vlaneseq
        %v1270 = vshrl.u32 %v1269, 7
        %v1271 = vsub.s32 3, %v1270
        %v1272 = vrot.slane %v1217, %v1271
        %v1273 = vlaneseq
        %v1274 = vshrl.u32 %v1273, 7
        %v1275 = vsub.s32 3, %v1274
        %v1276 = vrot.slane %v1218, %v1275
        %v1277 = vmul.f32 %v1267, %v1272
        %v1278 = vmul.f32 %v1267, %v1276
        %v1279 = vadd.f32 %v1263, %v1277
        %v1280 = vadd.f32 %v1264, %v1278
        %1281 = vset.pattern.permute.xlu0 7
        %1282 = vperm.xlu0 %1281, %v217
        %v1283 = vpop.permute.xlu0 %1282
        %v1285 = vadd.f32 %v1279, %v1283
        %v1286 = vadd.f32 %v1280, %v1283
        %1287 = vset.pattern.permute.xlu0 9
        %1288 = vperm.xlu0 %1287, %v217
        %v1289 = vpop.permute.xlu0 %1288
        %v1291 = vmul.f32 %v1285, %v1289
        %v1292 = vmul.f32 %v1286, %v1289
        %v1295 = vcombine.low %v1291, %v1292
        %v1297 = vadd.f32 %v1024, %v1295
        %1298 = vst [vmem:[%s213] sm:$0xff] %v1297
        %s1299 = sand.u32 %s97, 1
        %s1300 = scalar_lea.sflag [#allocation4], %s1299
        %s1301 = sand.u32 %s97, 1
        %s1302 = smul.addr %s1301, 8
        %s1303 = scalar_lea.vmem [#allocation8], %s1302
        // Predicated region
        $region45: #{tpu_custom_call.1} parent=31 // pred_check
          %p1304 = pneg %p107
        $region46: #{tpu_custom_call.1} parent=31 // pred_check_branch
          %1306 = sbr.rel (%p1304) target = $region48
        $region47: #{tpu_custom_call.1} parent=31 // pred_region
          %s1307 = smul.u32 2, %s21
          %s1309 = ssub.s32 128, 128
          %1310 = vsyncadd %s1300, %s1309
          %s1311 = smul.addr %s1307, 64
          %s1312 = scalar_lea.hbm %s3, %s1311
          %s1314 = sshll.u32 %s1303, 4
          %s1315 = int_to_ptr.vmem [resolvable:$true] %s1314
          %1317 = dma.vmem_to_hbm [thread:$0]  %s1315, 128, %s1312, %s1300
        $region48: #{tpu_custom_call.1} parent=31 // pred_fallthru
          _
      $region32: #{tpu_custom_call.1} parent=5 // pred_fallthru
        _
      %p1318 = scmp.le.s32.totalorder 2, %s16
      // Predicated region
      $region49: #{tpu_custom_call.1} parent=5 // pred_check
        %p1319 = pneg %p1318
      $region50: #{tpu_custom_call.1} parent=5 // pred_check_branch
        %1321 = sbr.rel (%p1319) target = $region52
      $region51: #{tpu_custom_call.1} parent=5 // pred_region
        %s1322 = ssub.s32 %s16, 2
        // Predicated region
        $region53: #{tpu_custom_call.1} parent=51 // pred_check
          %p1323 = pneg %p113
        $region54: #{tpu_custom_call.1} parent=51 // pred_check_branch
          %1325 = sbr.rel (%p1323) target = $region56
        $region55: #{tpu_custom_call.1} parent=51 // pred_region
          %s1326 = sand.u32 %s98, 1
          %s1327 = scalar_lea.sflag [#allocation4], %s1326
          %s1328 = sand.u32 %s98, 1
          %s1329 = smul.addr %s1328, 8
          %s1330 = scalar_lea.vmem [#allocation8], %s1329
          %1331 = dma.done %s1327, 128
        $region56: #{tpu_custom_call.1} parent=51 // pred_fallthru
          _
      $region52: #{tpu_custom_call.1} parent=5 // pred_fallthru
        _
    $region6: #{tpu_custom_call.1} parent=1 // loop_footer
      %s20 = sadd.s32 1, %s16
    $region7: #{tpu_custom_call.1} parent=1 // loop_footer_branch
      %15 = sbr.rel target = $region3
    $region8: #{tpu_custom_call.1} parent=1 // loop_exit
      _
    %1332 = vsyncpa [#allocation3], 1
    %s1333 = scalar_lea.sflag [#allocation3], 1
    %1334 = vsyncpa %s1333, 1
    %1335 = vsyncpa [#allocation6], 1
    %1336 = vsyncpa [#allocation4], 1
    %s1337 = scalar_lea.sflag [#allocation4], 1
    %1338 = vsyncpa %s1337, 1

</llo_original>
